<compile_context>
chip_gen: v5e
topology: v5e:2x2
jax: 0.10.0
libtpu: 0.0.40
codegen_flags: <defaults>
</compile_context>

<pallas_src>
import functools

import numpy as np
import jax
import jax.numpy as jnp
from jax import lax
from jax.experimental import pallas as pl
from jax.experimental.pallas import tpu as pltpu


# ----------------------------------------------------------------------------
# generation-aware VMEM budget
# ----------------------------------------------------------------------------
def _default_vmem_limit():
    try:
        cap = int(pltpu.get_tpu_info().vmem_capacity_bytes)
    except Exception:
        cap = 128 * 1024 * 1024
    # leave headroom for compiler-internal scratch: ~45 MiB on 64 MiB parts
    # (v7x), ~90 MiB on 128 MiB parts (v5e/v6e).
    return min(int(cap * 0.70), 96 * 1024 * 1024)


_VMEM_LIMIT = _default_vmem_limit()


# ----------------------------------------------------------------------------
# helpers
# ----------------------------------------------------------------------------
def _round_up(x, m):
    return (x + m - 1) // m * m


def _pick_m_tile(M):
    """Row tile that divides the (16-aligned) padded M; bounded fallback."""
    Mp = _round_up(M, 16)
    if Mp <= 512:
        return Mp, Mp
    for tm in (512, 384, 256, 128, 64, 32, 16):
        if Mp % tm == 0:
            return tm, Mp
    return 256, _round_up(Mp, 256)          # pad M rather than blow the budget


def _pick_k_tile(K):
    """K tile (multiple of 128 so x tiles stay lane-dense); bounded fallback."""
    if K <= 512:
        return K, K
    for tk in (512, 384, 256, 128):
        if K % tk == 0:
            return tk, K
    if K <= 2048:
        return K, K
    return 512, _round_up(K, 512)           # pad K rather than blow the budget


def _pick_n_tile(Np):
    if Np <= 512:
        return Np
    for tn in (512, 256, 128):
        if Np % tn == 0:
            return tn
    return 128


# ----------------------------------------------------------------------------
# fused matmul kernel:  out = act(x @ w + bias [+ residual])
#   x, w, residual in bf16 (MXU), f32 accumulator/epilogue, bf16/f32 output.
# ----------------------------------------------------------------------------
@functools.lru_cache(maxsize=None)
def _matmul_call(Mp, K, N, tm, tk, tn, act, has_res, out_dtype_name):
    out_dtype = jnp.dtype(out_dtype_name)
    nk = K // tk

    def _epilogue(acc, b, r):
        y = acc + b
        if r is not None:
            y = y + r.astype(jnp.float32)
        if act == "relu":
            y = jnp.maximum(y, 0.0)
        return y

    if nk == 1:
        # Single K step: no f32 scratch; store straight from the MXU pass.
        def kernel(*refs):
            if has_res:
                x_ref, w_ref, b_ref, r_ref, o_ref = refs
                r = r_ref[...]
            else:
                x_ref, w_ref, b_ref, o_ref = refs
                r = None
            acc = jnp.dot(x_ref[...], w_ref[...],
                          preferred_element_type=jnp.float32)
            o_ref[...] = _epilogue(acc, b_ref[...], r).astype(out_dtype)

        grid = (Mp // tm, N // tn)
        in_specs = [
            pl.BlockSpec((tm, tk), lambda i, j: (i, 0)),
            pl.BlockSpec((tk, tn), lambda i, j: (0, j)),
            pl.BlockSpec((1, tn), lambda i, j: (0, j)),
        ]
        if has_res:
            in_specs.append(pl.BlockSpec((tm, tn), lambda i, j: (i, j)))
        out_specs = pl.BlockSpec((tm, tn), lambda i, j: (i, j))
        scratch = []
        sem = ("parallel", "parallel")
    else:
        def kernel(*refs):
            if has_res:
                x_ref, w_ref, b_ref, r_ref, o_ref, acc_ref = refs
            else:
                x_ref, w_ref, b_ref, o_ref, acc_ref = refs
                r_ref = None
            k = pl.program_id(2)

            @pl.when(k == 0)
            def _():
                acc_ref[...] = jnp.zeros_like(acc_ref)

            acc_ref[...] += jnp.dot(x_ref[...], w_ref[...],
                                    preferred_element_type=jnp.float32)

            @pl.when(k == nk - 1)
            def _():
                r = r_ref[...] if has_res else None
                o_ref[...] = _epilogue(acc_ref[...], b_ref[...],
                                       r).astype(out_dtype)

        grid = (Mp // tm, N // tn, nk)
        in_specs = [
            pl.BlockSpec((tm, tk), lambda i, j, k: (i, k)),
            pl.BlockSpec((tk, tn), lambda i, j, k: (k, j)),
            pl.BlockSpec((1, tn), lambda i, j, k: (0, j)),
        ]
        if has_res:
            # TODO(synk): residual is only needed in the k==nk-1 epilogue;
            # single-buffering it would shave VMEM residency on 64MiB parts.
            in_specs.append(pl.BlockSpec((tm, tn), lambda i, j, k: (i, j)))
        out_specs = pl.BlockSpec((tm, tn), lambda i, j, k: (i, j))
        scratch = [pltpu.VMEM((tm, tn), jnp.float32)]
        sem = ("parallel", "parallel", "arbitrary")

    fn = pl.pallas_call(
        kernel,
        out_shape=jax.ShapeDtypeStruct((Mp, N), out_dtype),
        grid=grid,
        in_specs=in_specs,
        out_specs=out_specs,
        scratch_shapes=scratch,
        compiler_params=pltpu.CompilerParams(
            dimension_semantics=sem, vmem_limit_bytes=_VMEM_LIMIT),
    )
    return jax.jit(fn)


def matmul_bias(x, w, bias, *, act="none", residual=None,
                out_dtype=jnp.bfloat16):
    """y = act(x @ w + bias [+ residual]).  Output channels padded to a
    multiple of 128 (lane-dense stores) and sliced back afterwards."""
    M, K = x.shape
    N = w.shape[1]
    tm, Mp = _pick_m_tile(M)
    tk, Kp = _pick_k_tile(K)
    Np = _round_up(N, 128)
    tn = _pick_n_tile(Np)

    x = x.astype(jnp.bfloat16)
    w = w.astype(jnp.bfloat16)
    bias = bias.astype(jnp.float32)
    if Mp != M:
        x = jnp.pad(x, ((0, Mp - M), (0, 0)))
    if Kp != K:
        x = jnp.pad(x, ((0, 0), (0, Kp - K)))
        w = jnp.pad(w, ((0, Kp - K), (0, 0)))
    if Np != N:
        w = jnp.pad(w, ((0, 0), (0, Np - N)))
        bias = jnp.pad(bias, ((0, Np - N),))
    if residual is not None:
        residual = residual.astype(jnp.bfloat16)
        if Mp != M:
            residual = jnp.pad(residual, ((0, Mp - M), (0, 0)))
        if Np != N:
            residual = jnp.pad(residual, ((0, 0), (0, Np - N)))

    fn = _matmul_call(Mp, Kp, Np, tm, tk, tn, act, residual is not None,
                      jnp.dtype(out_dtype).name)
    args = [x, w, bias.reshape(1, Np)]
    if residual is not None:
        args.append(residual)
    out = fn(*args)
    if Mp != M or Np != N:
        out = out[:M, :N]
    return out


# ----------------------------------------------------------------------------
# stride-1 KxK conv kernel with in-kernel shifted-window (tap) accumulation.
# The padded image is flattened to (B, Hp*Wp, C): tap (di,dj) is then a pure
# constant row offset di*Wp+dj, so every tap is one contiguous-slice matmul.
# The "wide" output has Wp columns per row; the last KW-1 are wrap-around
# garbage and are sliced off on the host.  Fused bias + ReLU epilogue, bf16 out.
# ----------------------------------------------------------------------------
@functools.lru_cache(maxsize=None)
def _conv_s1_call(B, M, L, C, OCp, Wp, KH, KW):
    KK = KH * KW

    def kernel(x_ref, w_ref, b_ref, o_ref):
        xi = x_ref[0]                                        # (L, C) bf16
        acc = None
        for di in range(KH):
            for dj in range(KW):
                off = di * Wp + dj
                t = di * KW + dj
                d = jnp.dot(xi[off:off + M, :], w_ref[t],
                            preferred_element_type=jnp.float32)
                acc = d if acc is None else acc + d
        y = jnp.maximum(acc + b_ref[...], 0.0)
        o_ref[0] = y.astype(o_ref.dtype)

    fn = pl.pallas_call(
        kernel,
        out_shape=jax.ShapeDtypeStruct((B, M, OCp), jnp.bfloat16),
        grid=(B,),
        in_specs=[
            pl.BlockSpec((1, L, C), lambda b: (b, 0, 0)),
            pl.BlockSpec((KK, C, OCp), lambda b: (0, 0, 0)),
            pl.BlockSpec((1, OCp), lambda b: (0, 0)),
        ],
        out_specs=pl.BlockSpec((1, M, OCp), lambda b: (b, 0, 0)),
        compiler_params=pltpu.CompilerParams(
            dimension_semantics=("parallel",), vmem_limit_bytes=_VMEM_LIMIT),
    )
    return jax.jit(fn)


def conv2d_s1(x, w, bias):
    """Stride-1 KxK conv, pad=K//2, BN pre-folded bias, fused ReLU, bf16 out."""
    B, H, W, C = x.shape
    KH, KW, IC, OC = w.shape
    ph, pw = KH // 2, KW // 2
    OCp = _round_up(OC, 128)
    xb = x if x.dtype == jnp.bfloat16 else x.astype(jnp.bfloat16)
    # one extra zero bottom row keeps the wrap-around (garbage-column) reads
    # of the last image row in bounds
    xp = jnp.pad(xb, ((0, 0), (ph, ph + 1), (pw, pw), (0, 0)))
    Hp, Wp = H + 2 * ph + 1, W + 2 * pw
    L, M = Hp * Wp, H * Wp
    xf = xp.reshape(B, L, C)
    wf = w.reshape(KH * KW, IC, OC).astype(jnp.bfloat16)
    bf = bias.astype(jnp.float32)
    if OCp != OC:
        wf = jnp.pad(wf, ((0, 0), (0, 0), (0, OCp - OC)))
        bf = jnp.pad(bf, ((0, OCp - OC),))
    out = _conv_s1_call(B, M, L, C, OCp, Wp, KH, KW)(xf, wf, bf.reshape(1, OCp))
    # each "wide" row has Wp columns; first W are the valid conv outputs.
    return out.reshape(B, H, Wp, OCp)[:, :, :W, :OC]


# ----------------------------------------------------------------------------
# max-pool window reduction kernel (stem pool only; input is post-ReLU >= 0)
# ----------------------------------------------------------------------------
@functools.lru_cache(maxsize=None)
def _window_max_call(Mp, KK, C, tm, dtype_name):
    dt = jnp.dtype(dtype_name)

    def kernel(p_ref, o_ref):
        v = p_ref[:, 0, :]
        for k in range(1, KK):
            v = jnp.maximum(v, p_ref[:, k, :])
        o_ref[...] = v

    fn = pl.pallas_call(
        kernel,
        out_shape=jax.ShapeDtypeStruct((Mp, C), dt),
        grid=(Mp // tm,),
        in_specs=[pl.BlockSpec((tm, KK, C), lambda i: (i, 0, 0))],
        out_specs=pl.BlockSpec((tm, C), lambda i: (i, 0)),
        compiler_params=pltpu.CompilerParams(
            dimension_semantics=("parallel",), vmem_limit_bytes=_VMEM_LIMIT),
    )
    return jax.jit(fn)


def window_max(patches):
    M, KK, C = patches.shape
    tm, Mp = _pick_m_tile(M)
    if Mp != M:
        # pad rows with 0: safe because pooled input is post-ReLU (>= 0)
        patches = jnp.pad(patches, ((0, Mp - M), (0, 0), (0, 0)))
    out = _window_max_call(Mp, KK, C, tm, jnp.dtype(patches.dtype).name)(patches)
    return out if Mp == M else out[:M]


# ----------------------------------------------------------------------------
# fused PSP-stage kernel: 1x1 conv(+BN folded)+ReLU -> ChannelAttention ->
# SpatialAttention, all on the tiny pooled map held in VMEM.  Grid over batch.
# The 7x7 spatial-attention conv (pad=3, no bias) is pre-lowered to dense
# (Sp x Sp) matrices acting on the channel-mean / channel-max maps.
# ----------------------------------------------------------------------------
@functools.lru_cache(maxsize=None)
def _psp_stage_call(B, Sp, S, Cin, C, Ch):
    inv_s = 1.0 / float(S)
    inv_c = 1.0 / float(C)

    def kernel(x_ref, wc_ref, bc_ref, m_ref, w1_ref, w2_ref,
               aavg_ref, amax_ref, o_ref):
        x = x_ref[0]                                              # (Sp, Cin) bf16
        y = jnp.dot(x, wc_ref[...], preferred_element_type=jnp.float32)
        y = jnp.maximum(y + bc_ref[...], 0.0) * m_ref[...]        # mask pad rows

        # --- channel attention: shared 2-layer FC on global avg & max vectors
        avg = jnp.sum(y, axis=0, keepdims=True) * inv_s           # (1, C)
        mx = jnp.max(y, axis=0, keepdims=True)                    # (1, C), y >= 0
        rows = lax.broadcasted_iota(jnp.int32, (8, 1), 0)
        both = jnp.where(rows == 0, avg, mx).astype(jnp.bfloat16) # row0=avg
        h = jnp.maximum(jnp.dot(both, w1_ref[...],
                                preferred_element_type=jnp.float32), 0.0)
        fc = jnp.dot(h.astype(jnp.bfloat16), w2_ref[...],
                     preferred_element_type=jnp.float32)
        att_c = fc[0:1, :] + fc[1:2, :]                           # avg_out+max_out
        y = y * jax.nn.sigmoid(att_c)

        # --- spatial attention: channel mean/max -> dense "7x7 conv" -> gate
        avgc = (jnp.sum(y, axis=1, keepdims=True) * inv_c).astype(jnp.bfloat16)
        maxc = jnp.max(y, axis=1, keepdims=True).astype(jnp.bfloat16)
        att_s = (jnp.dot(aavg_ref[...], avgc, preferred_element_type=jnp.float32)
                 + jnp.dot(amax_ref[...], maxc, preferred_element_type=jnp.float32))
        o_ref[0] = y * jax.nn.sigmoid(att_s)

    fn = pl.pallas_call(
        kernel,
        out_shape=jax.ShapeDtypeStruct((B, Sp, C), jnp.float32),
        grid=(B,),
        in_specs=[
            pl.BlockSpec((1, Sp, Cin), lambda b: (b, 0, 0)),
            pl.BlockSpec((Cin, C), lambda b: (0, 0)),
            pl.BlockSpec((1, C), lambda b: (0, 0)),
            pl.BlockSpec((Sp, 1), lambda b: (0, 0)),
            pl.BlockSpec((C, Ch), lambda b: (0, 0)),
            pl.BlockSpec((Ch, C), lambda b: (0, 0)),
            pl.BlockSpec((Sp, Sp), lambda b: (0, 0)),
            pl.BlockSpec((Sp, Sp), lambda b: (0, 0)),
        ],
        out_specs=pl.BlockSpec((1, Sp, C), lambda b: (b, 0, 0)),
        compiler_params=pltpu.CompilerParams(
            dimension_semantics=("parallel",), vmem_limit_bytes=_VMEM_LIMIT),
    )
    return jax.jit(fn)


# ----------------------------------------------------------------------------
# conv / pool glue
# ----------------------------------------------------------------------------
def im2col(x, kh, kw, stride, pad):
    B, H, W, C = x.shape
    if pad:
        x = jnp.pad(x, ((0, 0), (pad, pad), (pad, pad), (0, 0)))
    Hp, Wp = H + 2 * pad, W + 2 * pad
    oh = (Hp - kh) // stride + 1
    ow = (Wp - kw) // stride + 1
    slabs = []
    for i in range(kh):
        for j in range(kw):
            slabs.append(x[:, i:i + stride * (oh - 1) + 1:stride,
                            j:j + stride * (ow - 1) + 1:stride, :])
    cols = jnp.stack(slabs, axis=3)                 # (B, oh, ow, kh*kw, C)
    return cols.reshape(B * oh * ow, kh * kw * C), oh, ow


def conv2d(x, w, bias, *, stride=1, pad=0, act="none", residual=None,
           out_dtype=jnp.bfloat16):
    """x: NHWC (f32/bf16), w: (KH,KW,IC,OC) with BN pre-folded, bias: (OC,).
    residual (optional, NHWC) is fused into the epilogue before ReLU."""
    B = x.shape[0]
    KH, KW, IC, OC = w.shape
    if (KH > 1 and KH == KW and stride == 1 and pad == KH // 2
            and residual is None and act == "relu"
            and out_dtype == jnp.bfloat16):
        return conv2d_s1(x, w, bias)                # in-kernel im2col path
    xb = x if x.dtype == jnp.bfloat16 else x.astype(jnp.bfloat16)
    if KH == 1 and KW == 1 and pad == 0:
        if stride != 1:
            xb = xb[:, ::stride, ::stride, :]
        oh, ow = xb.shape[1], xb.shape[2]
        cols = xb.reshape(B * oh * ow, IC)
    else:
        # TODO(synk): strided (stem 7x7, the three stride-2 3x3) convs still use
        # host-side im2col; a phase-decomposed in-kernel variant would remove it.
        cols, oh, ow = im2col(xb, KH, KW, stride, pad)
    res = None
    if residual is not None:
        res = residual.reshape(B * oh * ow, OC)
    y = matmul_bias(cols, w.reshape(KH * KW * IC, OC), bias, act=act,
                    residual=res, out_dtype=out_dtype)
    return y.reshape(B, oh, ow, OC)


def maxpool2d(x, k=3, stride=2, pad=1):
    # TODO(synk): still builds (M, 9, C) patches host-side (stem-only, tiny).
    B, H, W, C = x.shape
    cols, oh, ow = im2col(x, k, k, stride, pad)     # zero pad: input post-ReLU
    patches = cols.reshape(B * oh * ow, k * k, C)
    return window_max(patches).reshape(B, oh, ow, C)


# adaptive avg-pool / bilinear(align_corners=True) expressed as tiny matrix
# contractions in plain JAX (layout glue around the Pallas compute).
@functools.lru_cache(maxsize=None)
def _adaptive_matrix(in_size, out_size):
    m = np.zeros((out_size, in_size), np.float32)
    for i in range(out_size):
        start = (i * in_size) // out_size
        end = -((-(i + 1) * in_size) // out_size)
        m[i, start:end] = 1.0 / (end - start)
    return jnp.asarray(m)


@functools.lru_cache(maxsize=None)
def _interp_matrix(in_size, out_size):
    m = np.zeros((out_size, in_size), np.float32)
    if in_size == 1 or out_size == 1:
        m[:, 0] = 1.0
    else:
        for i in range(out_size):
            c = i * (in_size - 1) / (out_size - 1)
            lo = int(np.floor(c))
            hi = min(lo + 1, in_size - 1)
            w = c - lo
            m[i, lo] += 1.0 - w
            m[i, hi] += w
    return jnp.asarray(m)


def adaptive_avg_pool(x, out_sz):
    B, H, W, C = x.shape
    return jnp.einsum('oh,bhwc,pw->bopc', _adaptive_matrix(H, out_sz), x,
                      _adaptive_matrix(W, out_sz))


def bilinear_resize(x, oh, ow):
    B, H, W, C = x.shape
    return jnp.einsum('oh,bhwc,pw->bopc', _interp_matrix(H, oh), x,
                      _interp_matrix(W, ow))


# ----------------------------------------------------------------------------
# network forward (eval mode)
# ----------------------------------------------------------------------------
def bottleneck_forward(p, x):
    out = conv2d(x, p['w1'], p['b1'], act="relu")
    out = conv2d(out, p['w2'], p['b2'], stride=p['stride'], pad=1, act="relu")
    if 'wd' in p:
        idn = conv2d(x, p['wd'], p['bd'], stride=p['stride'], act="none")
    else:
        idn = x
    # third 1x1 conv with fused residual add + ReLU epilogue
    return conv2d(out, p['w3'], p['b3'], act="relu", residual=idn)


def psp_stage(st, feat):
    B, H, W, Cin = feat.shape
    bin_sz = st['bin']
    S = bin_sz * bin_sz
    Sp = st['sa_avg'].shape[0]
    oc = st['wc'].shape[1]
    hid = st['ca_w1'].shape[1]

    pooled = adaptive_avg_pool(feat, bin_sz).reshape(B, S, Cin)
    if Sp != S:
        pooled = jnp.pad(pooled, ((0, 0), (0, Sp - S), (0, 0)))
    pooled = pooled.astype(jnp.bfloat16)
    mask = (jnp.arange(Sp) < S).astype(jnp.float32).reshape(Sp, 1)

    fn = _psp_stage_call(B, Sp, S, Cin, oc, hid)
    y = fn(pooled, st['wc'], st['bc'].reshape(1, oc), mask,
           st['ca_w1'], st['ca_w2'], st['sa_avg'], st['sa_max'])
    y = y[:, :S, :].reshape(B, bin_sz, bin_sz, oc)
    return bilinear_resize(y, H, W)


def psp_module(p, feat):
    pyramids = [feat.astype(jnp.bfloat16)]
    for st in p['stages']:
        pyramids.append(psp_stage(st, feat).astype(jnp.bfloat16))
    cat = jnp.concatenate(pyramids, axis=-1)
    # bottleneck 1x1 conv (+bias, BN folded) + ReLU; Dropout2d identity in eval.
    return conv2d(cat, p['w'], p['b'], act="relu")


def pspnet_forward(P, x_nchw):
    x = jnp.transpose(x_nchw, (0, 2, 3, 1)).astype(jnp.float32)   # NCHW -> NHWC
    in_h, in_w = x.shape[1], x.shape[2]

    # initial: conv7x7/2 + BN + ReLU + maxpool3x3/2
    x = conv2d(x, P['stem_w'], P['stem_b'], stride=2, pad=3, act="relu")
    x = maxpool2d(x)

    for li in (1, 2, 3, 4):
        for blk in P[f'layer{li}']:
            x = bottleneck_forward(blk, x)

    # master branch: _PSPModule + 1x1 classifier conv (f32 output)
    x = psp_module(P['psp'], x)
    x = conv2d(x, P['cls_w'], P['cls_b'], act="none", out_dtype=jnp.float32)

    x = bilinear_resize(x, in_h, in_w)           # align_corners=True
    x = x[:, :in_h, :in_w, :]                    # parity with reference slice
    # TODO(synk): training-mode auxiliary branch is not executed (eval forward).
    return jnp.transpose(x, (0, 3, 1, 2))        # NHWC -> NCHW


# ----------------------------------------------------------------------------
# deterministic parameter construction + host-side folding
# ----------------------------------------------------------------------------
class Init:
    def __init__(self, seed=0):
        self.key = jax.random.PRNGKey(seed)
        self.i = 0

    def _next(self):
        self.i += 1
        return jax.random.fold_in(self.key, self.i)

    def conv(self, kh, kw, ic, oc):
        std = 0.5 * (2.0 / (kh * kw * ic)) ** 0.5
        return jax.random.normal(self._next(), (kh, kw, ic, oc), jnp.float32) * std

    def dense(self, ic, oc):
        std = 0.5 * (2.0 / ic) ** 0.5
        return jax.random.normal(self._next(), (ic, oc), jnp.float32) * std

    def bias(self, c):
        return jax.random.normal(self._next(), (c,), jnp.float32) * 0.01

    def bn(self, c):
        return (jnp.ones((c,), jnp.float32), jnp.zeros((c,), jnp.float32),
                jnp.zeros((c,), jnp.float32), jnp.ones((c,), jnp.float32))


def make_bottleneck(init, in_c, width, stride):
    p = {
        'w1': init.conv(1, 1, in_c, width), 'bn1': init.bn(width),
        'w2': init.conv(3, 3, width, width), 'bn2': init.bn(width),
        'w3': init.conv(1, 1, width, width * 4), 'bn3': init.bn(width * 4),
        'stride': stride,
    }
    if stride != 1 or in_c != width * 4:
        p['wd'] = init.conv(1, 1, in_c, width * 4)
        p['bnd'] = init.bn(width * 4)
    return p


def build_params(num_classes, in_channels=3, base=16):
    # TODO(synk): real ResNet-50 uses base=64 (m_out_sz=2048) with pretrained
    # weights; the same [3,4,6,3] bottleneck structure is kept at reduced width
    # with deterministic random init.
    init = Init(0)
    P = {'stem_w': init.conv(7, 7, in_channels, base), 'stem_bn': init.bn(base)}
    widths, nblocks, strides = [base, 2 * base, 4 * base, 8 * base], [3, 4, 6, 3], [1, 2, 2, 2]
    in_c = base
    for li, (w_, n_, s_) in enumerate(zip(widths, nblocks, strides), start=1):
        layer = []
        for b in range(n_):
            layer.append(make_bottleneck(init, in_c, w_, s_ if b == 0 else 1))
            in_c = w_ * 4
        P[f'layer{li}'] = layer
    m_out = in_c
    oc = m_out // 4
    stages = []
    for _ in (1, 2, 3, 6):
        stages.append({
            'w': init.conv(1, 1, m_out, oc), 'bn': init.bn(oc),
            'ca_w1': init.dense(oc, oc // 16), 'ca_w2': init.dense(oc // 16, oc),
            'sa_w': init.conv(7, 7, 2, 1),
        })
    P['psp'] = {'stages': stages,
                'w': init.conv(1, 1, m_out + 4 * oc, oc),
                'b': init.bias(oc),
                'bn': init.bn(oc)}
    P['cls_w'] = init.conv(1, 1, oc, num_classes)
    P['cls_b'] = init.bias(num_classes)
    return P


def _fold(w, bn, eps=1e-5):
    gamma, beta, mean, var = bn
    s = gamma / jnp.sqrt(var + eps)
    return (w * s).astype(jnp.bfloat16), beta - mean * s


def _sa_dense(w_sa, bin_sz):
    """Lower the 7x7 pad=3 spatial-attention conv (2->1, no bias) acting on a
    bin x bin map to two dense (Sp x Sp) matrices (avg-channel / max-channel)."""
    S = bin_sz * bin_sz
    Sp = max(8, _round_up(S, 8))
    A = np.zeros((2, Sp, Sp), np.float32)
    r = 3
    for i in range(bin_sz):
        for j in range(bin_sz):
            so = i * bin_sz + j
            for p in range(bin_sz):
                for q in range(bin_sz):
                    dy, dx = p - i + r, q - j + r
                    if 0 <= dy < 7 and 0 <= dx < 7:
                        si = p * bin_sz + q
                        A[0, so, si] = w_sa[dy, dx, 0, 0]
                        A[1, so, si] = w_sa[dy, dx, 1, 0]
    return jnp.asarray(A[0]), jnp.asarray(A[1])


def fold_params(P):
    """Pre-fold every BatchNorm into the preceding conv weights (host-side);
    conv/FC weights are stored in bf16 (MXU operands), biases in f32."""
    F = {}
    F['stem_w'], F['stem_b'] = _fold(P['stem_w'], P['stem_bn'])
    for li in (1, 2, 3, 4):
        layer = []
        for p in P[f'layer{li}']:
            q = {'stride': p['stride']}
            q['w1'], q['b1'] = _fold(p['w1'], p['bn1'])
            q['w2'], q['b2'] = _fold(p['w2'], p['bn2'])
            q['w3'], q['b3'] = _fold(p['w3'], p['bn3'])
            if 'wd' in p:
                q['wd'], q['bd'] = _fold(p['wd'], p['bnd'])
            layer.append(q)
        F[f'layer{li}'] = layer

    stages = []
    for st, b_s in zip(P['psp']['stages'], (1, 2, 3, 6)):
        wcf, bc = _fold(st['w'], st['bn'])
        cin, oc = wcf.shape[2], wcf.shape[3]
        aavg, amax = _sa_dense(np.asarray(jax.device_get(st['sa_w'])), b_s)
        stages.append({'bin': b_s,
                       'wc': wcf.reshape(cin, oc), 'bc': bc,
                       'ca_w1': st['ca_w1'].astype(jnp.bfloat16),
                       'ca_w2': st['ca_w2'].astype(jnp.bfloat16),
                       'sa_avg': aavg.astype(jnp.bfloat16),
                       'sa_max': amax.astype(jnp.bfloat16)})

    s = P['psp']
    gamma, beta, mean, var = s['bn']
    sc = gamma / jnp.sqrt(var + 1e-5)
    sh = beta - mean * sc
    F['psp'] = {'stages': stages,
                'w': (s['w'] * sc).astype(jnp.bfloat16),
                'b': s['b'] * sc + sh}          # conv bias folded through BN
    F['cls_w'] = P['cls_w'].astype(jnp.bfloat16)
    F['cls_b'] = P['cls_b']
    return F


# ----------------------------------------------------------------------------
if __name__ == "__main__":
    num_classes = 5
    raw_params = build_params(num_classes, in_channels=3, base=16)
    params = fold_params(raw_params)

    key = jax.random.PRNGKey(0)
    x = jax.random.normal(key, (2, 3, 96, 96), jnp.float32)   # NCHW like PyTorch

    fwd = jax.jit(functools.partial(pspnet_forward, params))
    out = jax.block_until_ready(fwd(x))

    assert out.shape == (2, num_classes, 96, 96), out.shape
    assert bool(jnp.all(jnp.isfinite(out)))
    print("KERNEL_OK")
</pallas_src>

<mosaic_0001>
module attributes {stable_mosaic.version = 11 : i64} {
  func.func @kernel(%arg0: i32, %arg1: i32, %arg2: memref<512x147xbf16, #tpu.memory_space<vmem>>, %arg3: memref<147x128xbf16, #tpu.memory_space<vmem>>, %arg4: memref<1x128xf32, #tpu.memory_space<vmem>>, %arg5: memref<512x128xbf16, #tpu.memory_space<vmem>>) attributes {dimension_semantics = [#tpu.dimension_semantics<parallel>, #tpu.dimension_semantics<parallel>], iteration_bounds = array<i64: 9, 1>, scalar_prefetch = 0 : i64, scratch_operands = 0 : i64, tpu.core_type = #tpu.core_type<tc>, window_params = [{transform_indices = @transform_0, window_bounds = array<i64: 512, 147>}, {transform_indices = @transform_1, window_bounds = array<i64: 147, 128>}, {transform_indices = @transform_2, window_bounds = array<i64: 1, 128>}, {transform_indices = @transform_3, window_bounds = array<i64: 512, 128>}]} {
    %c0 = arith.constant 0 : index
    %c0_0 = arith.constant 0 : index
    %0 = vector.load %arg2[%c0, %c0_0] : memref<512x147xbf16, #tpu.memory_space<vmem>>, vector<512x147xbf16>
    %c0_1 = arith.constant 0 : index
    %c0_2 = arith.constant 0 : index
    %1 = vector.load %arg3[%c0_1, %c0_2] : memref<147x128xbf16, #tpu.memory_space<vmem>>, vector<147x128xbf16>
    %cst = arith.constant dense<0.000000e+00> : vector<512x128xf32>
    %2 = tpu.matmul %0, %1, %cst {dimension_numbers = #tpu.dot_dimension_numbers<[1], [0], [0], [1], [0, 0, 1, 1], [], []>} : vector<512x147xbf16>, vector<147x128xbf16>, vector<512x128xf32> -> vector<512x128xf32>
    %c0_3 = arith.constant 0 : index
    %c0_4 = arith.constant 0 : index
    %3 = vector.load %arg4[%c0_3, %c0_4] : memref<1x128xf32, #tpu.memory_space<vmem>>, vector<1x128xf32>
    %4 = vector.broadcast %3 : vector<1x128xf32> to vector<512x128xf32>
    %5 = arith.addf %2, %4 : vector<512x128xf32>
    %cst_5 = arith.constant 0.000000e+00 : f32
    %6 = vector.broadcast %cst_5 : f32 to vector<512x128xf32>
    %7 = arith.maximumf %5, %6 : vector<512x128xf32>
    %8 = arith.truncf %7 : vector<512x128xf32> to vector<512x128xbf16>
    %c0_6 = arith.constant 0 : index
    %c0_7 = arith.constant 0 : index
    %9 = vector.load %arg5[%c0_6, %c0_7] : memref<512x128xbf16, #tpu.memory_space<vmem>>, vector<512x128xbf16>
    tpu.vector_store %arg5[%c0_6, %c0_7], %8 {strides = array<i32>} : memref<512x128xbf16, #tpu.memory_space<vmem>>, vector<512x128xbf16>,
    return
  }
  func.func @transform_0(%arg0: i32, %arg1: i32) -> (i32, i32) {
    %c0_i32 = arith.constant 0 : i32
    %c0_i32_0 = arith.constant 0 : i32
    return %arg0, %c0_i32 : i32, i32
  }
  func.func @transform_1(%arg0: i32, %arg1: i32) -> (i32, i32) {
    %c0_i32 = arith.constant 0 : i32
    %c0_i32_0 = arith.constant 0 : i32
    return %c0_i32, %arg1 : i32, i32
  }
  func.func @transform_2(%arg0: i32, %arg1: i32) -> (i32, i32) {
    %c0_i32 = arith.constant 0 : i32
    %c0_i32_0 = arith.constant 0 : i32
    return %c0_i32, %arg1 : i32, i32
  }
  func.func @transform_3(%arg0: i32, %arg1: i32) -> (i32, i32) {
    %c0_i32 = arith.constant 0 : i32
    return %arg0, %arg1 : i32, i32
  }
}

</mosaic_0001>

<llo_original>
// kernel: tpu_custom_call.1
$region0: #{tpu_custom_call.1}
  #allocation0 [shape = 'u32[]', space=smem, size = 0x4, offset = 0x4, fixed_abs, tag = 'smem constant byte address 0x4 - core index']
  #allocation1 [shape = 'u32[72,128]{1,0:T(1,128)}', space=vmem, size = 0x9000, scoped, tag = 'internal scratch']
  %s0 = inlined_call_operand.vmem [shape: bf16[4608,147], index: 0, kind: input, shape index: {}]
  %s1 = inlined_call_operand.vmem [shape: bf16[147,128], index: 1, kind: input, shape index: {}]
  %s2 = inlined_call_operand.vmem [shape: f32[1,128], index: 2, kind: input, shape index: {}]
  %s3 = inlined_call_operand.hbm [shape: bf16[4608,128], index: 3, kind: output, shape index: {}]
  %s4 = sld [smem:[#allocation0]]
  $region45: #{tpu_custom_call.1} parent=0
    _
  %s6 = ssub.s32 1, %s4
  %s7 = scalar_select 0, %s6, %s4
  $region1: #{tpu_custom_call.1} parent=0
    #allocation2 [shape = 'u8[262144]{0}', space=vmem, size = 0x40000, scoped, tag = 'output window, operand 0']
    #allocation3 [shape = 's32[2]{0}', space=sflag, size = 0x8, scoped, tag = 'scoped memory for tpu_custom_call.1']
    %8 = vsyncpa [#allocation3], 0
    %s9 = scalar_lea.sflag [#allocation3], 1
    %10 = vsyncpa %s9, 0
    loop: start=0, step=1, limit=11
    $region2: #{tpu_custom_call.1} parent=1 // loop_pre_header
      _
    $region3: #{tpu_custom_call.1} parent=1 // loop_header
      %s12 = sphi 0, %s16
      %p13 = scmp.ge.s32.totalorder %s12, 11
      %s19 = sphi 0, %s31
      %s20 = sphi 0, %s27
      %s21 = sphi 0, %s19
      %s22 = sphi 0, %s20
      %s23 = sphi 0, %s21
      %s24 = sphi 0, %s22
      %s34 = sphi 0, %s36
      %s37 = sphi 0, %s34
      %s38 = sphi 0, %s37
      %s54 = sphi 0, %s38
      %s60 = sphi 0, %s62
      %s63 = sphi 0, %s60
      %s64 = sphi 0, %s63
      %s80 = sphi 0, %s64
      %s86 = sphi 0, %s88
      %s89 = sphi 0, %s86
      %s90 = sphi 0, %s89
      %s106 = sphi 0, %s90
      %s114 = sphi 0, %s116
      %s117 = sphi 0, %s114
      %s118 = sphi 0, %s117
      %s134 = sphi 0, %s118
    $region4: #{tpu_custom_call.1} parent=1 // loop_header_branch
      %15 = sbr.rel (%p13) target = $region8
    $region5: #{tpu_custom_call.1} parent=1 // loop_body
      %s17 = ssub.s32 %s12, 1
      %s18 = ssub.s32 %s12, 2
      %s25 = sadd.s32 1, %s20
      %p26 = scmp.ge.s32.totalorder %s25, 1
      %s27 = scalar_select %p26, 0, %s25
      %s28 = sadd.s32 1, %s19
      %s29 = scalar_select %p26, %s28, %s19
      %p30 = scmp.ge.s32.totalorder %s29, 9
      %s31 = scalar_select %p30, 0, %s29
      %s32 = ssub.s32 %s19, %s31
      %p33 = scmp.eq.s32.totalorder %s32, 0
      %s35 = sadd.s32 %s34, 1
      %s36 = scalar_select %p33, %s34, %s35
      %p39 = pneg %p33
      %p40 = scmp.eq.s32.totalorder %s12, 8
      %p41 = por %p39, %p40
      %p42 = scmp.ne.s32.totalorder %s34, %s37
      %p43 = scmp.eq.s32.totalorder %s12, 0
      %p44 = por %p42, %p43
      %p45 = scmp.ne.s32.totalorder %s34, %s37
      %p46 = scmp.eq.s32.totalorder %s17, 8
      %p47 = por %p45, %p46
      %p48 = scmp.ne.s32.totalorder %s37, %s38
      %p49 = scmp.eq.s32.totalorder %s17, 0
      %p50 = por %p48, %p49
      %p51 = scmp.ne.s32.totalorder %s37, %s38
      %p52 = scmp.eq.s32.totalorder %s18, 8
      %p53 = por %p51, %p52
      %p55 = scmp.ne.s32.totalorder %s38, %s54
      %p56 = scmp.eq.s32.totalorder %s18, 0
      %p57 = por %p55, %p56
      %s58 = ssub.s32 %s20, %s27
      %p59 = scmp.eq.s32.totalorder %s58, 0
      %s61 = sadd.s32 %s60, 1
      %s62 = scalar_select %p59, %s60, %s61
      %p65 = pneg %p59
      %p66 = scmp.eq.s32.totalorder %s12, 8
      %p67 = por %p65, %p66
      %p68 = scmp.ne.s32.totalorder %s60, %s63
      %p69 = scmp.eq.s32.totalorder %s12, 0
      %p70 = por %p68, %p69
      %p71 = scmp.ne.s32.totalorder %s60, %s63
      %p72 = scmp.eq.s32.totalorder %s17, 8
      %p73 = por %p71, %p72
      %p74 = scmp.ne.s32.totalorder %s63, %s64
      %p75 = scmp.eq.s32.totalorder %s17, 0
      %p76 = por %p74, %p75
      %p77 = scmp.ne.s32.totalorder %s63, %s64
      %p78 = scmp.eq.s32.totalorder %s18, 8
      %p79 = por %p77, %p78
      %p81 = scmp.ne.s32.totalorder %s64, %s80
      %p82 = scmp.eq.s32.totalorder %s18, 0
      %p83 = por %p81, %p82
      %s84 = ssub.s32 %s20, %s27
      %p85 = scmp.eq.s32.totalorder %s84, 0
      %s87 = sadd.s32 %s86, 1
      %s88 = scalar_select %p85, %s86, %s87
      %p91 = pneg %p85
      %p92 = scmp.eq.s32.totalorder %s12, 8
      %p93 = por %p91, %p92
      %p94 = scmp.ne.s32.totalorder %s86, %s89
      %p95 = scmp.eq.s32.totalorder %s12, 0
      %p96 = por %p94, %p95
      %p97 = scmp.ne.s32.totalorder %s86, %s89
      %p98 = scmp.eq.s32.totalorder %s17, 8
      %p99 = por %p97, %p98
      %p100 = scmp.ne.s32.totalorder %s89, %s90
      %p101 = scmp.eq.s32.totalorder %s17, 0
      %p102 = por %p100, %p101
      %p103 = scmp.ne.s32.totalorder %s89, %s90
      %p104 = scmp.eq.s32.totalorder %s18, 8
      %p105 = por %p103, %p104
      %p107 = scmp.ne.s32.totalorder %s90, %s106
      %p108 = scmp.eq.s32.totalorder %s18, 0
      %p109 = por %p107, %p108
      %s110 = ssub.s32 %s19, %s31
      %s111 = ssub.s32 %s20, %s27
      %s112 = sor.u32 %s110, %s111
      %p113 = scmp.eq.s32.totalorder %s112, 0
      %s115 = sadd.s32 %s114, 1
      %s116 = scalar_select %p113, %s114, %s115
      %p119 = pneg %p113
      %p120 = scmp.eq.s32.totalorder %s12, 8
      %p121 = por %p119, %p120
      %p122 = scmp.ne.s32.totalorder %s114, %s117
      %p123 = scmp.eq.s32.totalorder %s12, 0
      %p124 = por %p122, %p123
      %p125 = scmp.ne.s32.totalorder %s114, %s117
      %p126 = scmp.eq.s32.totalorder %s17, 8
      %p127 = por %p125, %p126
      %p128 = scmp.ne.s32.totalorder %s117, %s118
      %p129 = scmp.eq.s32.totalorder %s17, 0
      %p130 = por %p128, %p129
      %p131 = scmp.ne.s32.totalorder %s117, %s118
      %p132 = scmp.eq.s32.totalorder %s18, 8
      %p133 = por %p131, %p132
      %p135 = scmp.ne.s32.totalorder %s118, %s134
      %p136 = scmp.eq.s32.totalorder %s18, 0
      %p137 = por %p135, %p136
      %p138 = scmp.le.s32.totalorder 1, %s12
      %p139 = scmp.lt.s32.totalorder %s12, 10
      %p140 = pnand %p138, %p139
      %p141 = pneg %p140
      // Predicated region
      $region9: #{tpu_custom_call.1} parent=5 // pred_check
        _
      $region10: #{tpu_custom_call.1} parent=5 // pred_check_branch
        %143 = sbr.rel (%p140) target = $region12
      $region11: #{tpu_custom_call.1} parent=5 // pred_region
        %s144 = ssub.s32 %s12, 1
        // Predicated region
        $region13: #{tpu_custom_call.1} parent=11 // pred_check
          %p145 = pneg %p76
        $region14: #{tpu_custom_call.1} parent=11 // pred_check_branch
          %147 = sbr.rel (%p145) target = $region16
        $region15: #{tpu_custom_call.1} parent=11 // pred_region
          %p148 = scmp.lt.s32.totalorder %s22, 0
          %s149 = scalar_select %p148, %s22, 0
          %s150 = smul.addr %s149, 4
          %s151 = scalar_lea.vmem %s1, %s150
        $region16: #{tpu_custom_call.1} parent=11 // pred_fallthru
          _
        // Predicated region
        $region17: #{tpu_custom_call.1} parent=11 // pred_check
          %p152 = pneg %p102
        $region18: #{tpu_custom_call.1} parent=11 // pred_check_branch
          %154 = sbr.rel (%p152) target = $region20
        $region19: #{tpu_custom_call.1} parent=11 // pred_region
          %p155 = scmp.lt.s32.totalorder %s22, 0
          %s156 = scalar_select %p155, %s22, 0
          %s157 = scalar_lea.vmem %s2, %s156
        $region20: #{tpu_custom_call.1} parent=11 // pred_fallthru
          _
      $region12: #{tpu_custom_call.1} parent=5 // pred_fallthru
        _
      %p158 = scmp.lt.s32.totalorder %s12, 9
      // Predicated region
      $region21: #{tpu_custom_call.1} parent=5 // pred_check
        %p159 = pneg %p158
      $region22: #{tpu_custom_call.1} parent=5 // pred_check_branch
        %161 = sbr.rel (%p159) target = $region24
      $region23: #{tpu_custom_call.1} parent=5 // pred_region
        // Predicated region
        $region25: #{tpu_custom_call.1} parent=23 // pred_check
          %p162 = pneg %p44
        $region26: #{tpu_custom_call.1} parent=23 // pred_check_branch
          %164 = sbr.rel (%p162) target = $region28
        $region27: #{tpu_custom_call.1} parent=23 // pred_region
          %s165 = smul.u32 64, %s19
          %p166 = scmp.lt.s32.totalorder %s165, 575
          %s167 = scalar_select %p166, %s165, 575
          %s168 = smul.addr %s167, 2
          %s169 = smul.addr %s168, 4
          %s170 = scalar_lea.vmem %s0, %s169
          %s171 = smul.u32 64, %s19
        $region28: #{tpu_custom_call.1} parent=23 // pred_fallthru
          _
      $region24: #{tpu_custom_call.1} parent=5 // pred_fallthru
        _
      %p172 = scmp.le.s32.totalorder 1, %s12
      %p173 = scmp.lt.s32.totalorder %s12, 10
      %p174 = pnand %p172, %p173
      %p175 = pneg %p174
      // Predicated region
      $region29: #{tpu_custom_call.1} parent=5 // pred_check
        _
      $region30: #{tpu_custom_call.1} parent=5 // pred_check_branch
        %177 = sbr.rel (%p174) target = $region32
      $region31: #{tpu_custom_call.1} parent=5 // pred_region
        %s178 = ssub.s32 %s12, 1
        %s179 = smul.u32 64, %s21
        %p180 = scmp.lt.s32.totalorder %s179, 575
        %s181 = scalar_select %p180, %s179, 575
        %s182 = smul.addr %s181, 2
        %s183 = smul.addr %s182, 4
        %s184 = scalar_lea.vmem %s0, %s183
        %p185 = pneg %p50
        %p186 = pneg %p47
        %p187 = scmp.lt.s32.totalorder %s22, 0
        %s188 = scalar_select %p187, %s22, 0
        %s189 = smul.addr %s188, 4
        %s190 = scalar_lea.vmem %s1, %s189
        %p191 = pneg %p76
        %p192 = pneg %p73
        %p193 = scmp.lt.s32.totalorder %s22, 0
        %s194 = scalar_select %p193, %s22, 0
        %s195 = scalar_lea.vmem %s2, %s194
        %p196 = pneg %p102
        %p197 = pneg %p99
        %p198 = pneg %p130
        %p199 = pneg %p127
        %s200 = sand.u32 %s117, 1
        %s201 = scalar_lea.sflag [#allocation3], %s200
        %s202 = sand.u32 %s117, 1
        %s203 = smul.addr %s202, 256
        %s204 = scalar_lea.vmem [#allocation2], %s203
        %s205 = smul.u32 64, %s21
        %p206 = scmp.lt.s32.totalorder %s205, 575
        %s207 = scalar_select %p206, %s205, 575
        %s208 = smul.addr %s207, 2
        %s209 = smul.addr %s208, 4
        %s210 = scalar_lea.vmem %s0, %s209
        %s211 = smul.u32 64, %s21
        %p212 = scmp.lt.s32.totalorder %s22, 0
        %s213 = scalar_select %p212, %s22, 0
        %s214 = smul.addr %s213, 4
        %s215 = scalar_lea.vmem %s1, %s214
        %p216 = scmp.lt.s32.totalorder %s22, 0
        %s217 = scalar_select %p216, %s22, 0
        %s218 = scalar_lea.vmem %s2, %s217
        %s219 = smul.u32 64, %s21
        %v221 = vld [vmem:[%s210] sm:$0xff]
        %v222 = vld [vmem:[%s210 + $0x8] sm:$0xff]
        %v223 = vld [vmem:[%s210 + $0x10] sm:$0xff]
        %v224 = vld [vmem:[%s210 + $0x18] sm:$0xff]
        %v225 = vld [vmem:[%s210 + $0x20] sm:$0xff]
        %v226 = vld [vmem:[%s210 + $0x28] sm:$0xff]
        %v227 = vld [vmem:[%s210 + $0x30] sm:$0xff]
        %v228 = vld [vmem:[%s210 + $0x38] sm:$0xff]
        %v229 = vld [vmem:[%s210 + $0x40] sm:$0xff]
        %v230 = vld [vmem:[%s210 + $0x48] sm:$0xff]
        %v231 = vld [vmem:[%s210 + $0x50] sm:$0xff]
        %v232 = vld [vmem:[%s210 + $0x58] sm:$0xff]
        %v233 = vld [vmem:[%s210 + $0x60] sm:$0xff]
        %v234 = vld [vmem:[%s210 + $0x68] sm:$0xff]
        %v235 = vld [vmem:[%s210 + $0x70] sm:$0xff]
        %v236 = vld [vmem:[%s210 + $0x78] sm:$0xff]
        %v237 = vld [vmem:[%s210 + $0x80] sm:$0xff]
        %v238 = vld [vmem:[%s210 + $0x88] sm:$0xff]
        %v239 = vld [vmem:[%s210 + $0x90] sm:$0xff]
        %v240 = vld [vmem:[%s210 + $0x98] sm:$0xff]
        %v241 = vld [vmem:[%s210 + $0xa0] sm:$0xff]
        %v242 = vld [vmem:[%s210 + $0xa8] sm:$0xff]
        %v243 = vld [vmem:[%s210 + $0xb0] sm:$0xff]
        %v244 = vld [vmem:[%s210 + $0xb8] sm:$0xff]
        %v245 = vld [vmem:[%s210 + $0xc0] sm:$0xff]
        %v246 = vld [vmem:[%s210 + $0xc8] sm:$0xff]
        %v247 = vld [vmem:[%s210 + $0xd0] sm:$0xff]
        %v248 = vld [vmem:[%s210 + $0xd8] sm:$0xff]
        %v249 = vld [vmem:[%s210 + $0xe0] sm:$0xff]
        %v250 = vld [vmem:[%s210 + $0xe8] sm:$0xff]
        %v251 = vld [vmem:[%s210 + $0xf0] sm:$0xff]
        %v252 = vld [vmem:[%s210 + $0xf8] sm:$0xff]
        %v253 = vld [vmem:[%s210 + $0x100] sm:$0xff]
        %v254 = vld [vmem:[%s210 + $0x108] sm:$0xff]
        %v255 = vld [vmem:[%s210 + $0x110] sm:$0xff]
        %v256 = vld [vmem:[%s210 + $0x118] sm:$0xff]
        %v257 = vld [vmem:[%s210 + $0x120] sm:$0xff]
        %v258 = vld [vmem:[%s210 + $0x128] sm:$0xff]
        %v259 = vld [vmem:[%s210 + $0x130] sm:$0xff]
        %v260 = vld [vmem:[%s210 + $0x138] sm:$0xff]
        %v261 = vld [vmem:[%s210 + $0x140] sm:$0xff]
        %v262 = vld [vmem:[%s210 + $0x148] sm:$0xff]
        %v263 = vld [vmem:[%s210 + $0x150] sm:$0xff]
        %v264 = vld [vmem:[%s210 + $0x158] sm:$0xff]
        %v265 = vld [vmem:[%s210 + $0x160] sm:$0xff]
        %v266 = vld [vmem:[%s210 + $0x168] sm:$0xff]
        %v267 = vld [vmem:[%s210 + $0x170] sm:$0xff]
        %v268 = vld [vmem:[%s210 + $0x178] sm:$0xff]
        %v269 = vld [vmem:[%s210 + $0x180] sm:$0xff]
        %v270 = vld [vmem:[%s210 + $0x188] sm:$0xff]
        %v271 = vld [vmem:[%s210 + $0x190] sm:$0xff]
        %v272 = vld [vmem:[%s210 + $0x198] sm:$0xff]
        %v273 = vld [vmem:[%s210 + $0x1a0] sm:$0xff]
        %v274 = vld [vmem:[%s210 + $0x1a8] sm:$0xff]
        %v275 = vld [vmem:[%s210 + $0x1b0] sm:$0xff]
        %v276 = vld [vmem:[%s210 + $0x1b8] sm:$0xff]
        %v277 = vld [vmem:[%s210 + $0x1c0] sm:$0xff]
        %v278 = vld [vmem:[%s210 + $0x1c8] sm:$0xff]
        %v279 = vld [vmem:[%s210 + $0x1d0] sm:$0xff]
        %v280 = vld [vmem:[%s210 + $0x1d8] sm:$0xff]
        %v281 = vld [vmem:[%s210 + $0x1e0] sm:$0xff]
        %v282 = vld [vmem:[%s210 + $0x1e8] sm:$0xff]
        %v283 = vld [vmem:[%s210 + $0x1f0] sm:$0xff]
        %v284 = vld [vmem:[%s210 + $0x1f8] sm:$0xff]
        %v285 = vld [vmem:[%s215] sm:$0xf]
        %v286 = vld [vmem:[%s215 + $0x4] sm:$0xf]
        %v287 = vld [vmem:[%s215 + $0x8] sm:$0xf]
        %v288 = vld [vmem:[%s215 + $0xc] sm:$0xf]
        %v289 = vld [vmem:[%s215 + $0x10] sm:$0xf]
        %v290 = vld [vmem:[%s215 + $0x14] sm:$0xf]
        %v291 = vld [vmem:[%s215 + $0x18] sm:$0xf]
        %v292 = vld [vmem:[%s215 + $0x1c] sm:$0xf]
        %v293 = vld [vmem:[%s215 + $0x20] sm:$0xf]
        %v294 = vld [vmem:[%s215 + $0x24] sm:$0xf]
        %v295 = vld [vmem:[%s215 + $0x28] sm:$0xf]
        %v296 = vld [vmem:[%s215 + $0x2c] sm:$0xf]
        %v297 = vld [vmem:[%s215 + $0x30] sm:$0xf]
        %v298 = vld [vmem:[%s215 + $0x34] sm:$0xf]
        %v299 = vld [vmem:[%s215 + $0x38] sm:$0xf]
        %v300 = vld [vmem:[%s215 + $0x3c] sm:$0xf]
        %v301 = vld [vmem:[%s215 + $0x40] sm:$0xf]
        %v302 = vld [vmem:[%s215 + $0x44] sm:$0xf]
        %v303 = vld [vmem:[%s215 + $0x48] sm:$0x3]
        %v304 = vld [vmem:[%s218] sm:$0x1]
        %v306 = vperm.slane %v304, 0
        %v372 = vunpack.c.l.b16 %v221
        %v373 = vunpack.c.h.b16 %v221
        %v374 = vunpack.c.l.b16 %v222
        %v375 = vunpack.c.h.b16 %v222
        %v376 = vunpack.c.l.b16 %v223
        %v377 = vunpack.c.h.b16 %v223
        %v378 = vunpack.c.l.b16 %v224
        %v379 = vunpack.c.h.b16 %v224
        %v380 = vunpack.c.l.b16 %v225
        %v381 = vunpack.c.h.b16 %v225
        %v382 = vunpack.c.l.b16 %v226
        %v383 = vunpack.c.h.b16 %v226
        %v384 = vunpack.c.l.b16 %v227
        %v385 = vunpack.c.h.b16 %v227
        %v386 = vunpack.c.l.b16 %v228
        %v387 = vunpack.c.h.b16 %v228
        %v388 = vunpack.c.l.b16 %v229
        %v389 = vunpack.c.h.b16 %v229
        %v390 = vunpack.c.l.b16 %v230
        %v391 = vunpack.c.h.b16 %v230
        %v392 = vunpack.c.l.b16 %v231
        %v393 = vunpack.c.h.b16 %v231
        %v394 = vunpack.c.l.b16 %v232
        %v395 = vunpack.c.h.b16 %v232
        %v396 = vunpack.c.l.b16 %v233
        %v397 = vunpack.c.h.b16 %v233
        %v398 = vunpack.c.l.b16 %v234
        %v399 = vunpack.c.h.b16 %v234
        %v400 = vunpack.c.l.b16 %v235
        %v401 = vunpack.c.h.b16 %v235
        %v402 = vunpack.c.l.b16 %v236
        %v403 = vunpack.c.h.b16 %v236
        %v404 = vunpack.c.l.b16 %v237
        %v405 = vunpack.c.h.b16 %v237
        %v406 = vunpack.c.l.b16 %v238
        %v407 = vunpack.c.h.b16 %v238
        %v408 = vunpack.c.l.b16 %v239
        %v409 = vunpack.c.h.b16 %v239
        %v410 = vunpack.c.l.b16 %v240
        %v411 = vunpack.c.h.b16 %v240
        %v412 = vunpack.c.l.b16 %v241
        %v413 = vunpack.c.h.b16 %v241
        %v414 = vunpack.c.l.b16 %v242
        %v415 = vunpack.c.h.b16 %v242
        %v416 = vunpack.c.l.b16 %v243
        %v417 = vunpack.c.h.b16 %v243
        %v418 = vunpack.c.l.b16 %v244
        %v419 = vunpack.c.h.b16 %v244
        %v420 = vunpack.c.l.b16 %v245
        %v421 = vunpack.c.h.b16 %v245
        %v422 = vunpack.c.l.b16 %v246
        %v423 = vunpack.c.h.b16 %v246
        %v424 = vunpack.c.l.b16 %v247
        %v425 = vunpack.c.h.b16 %v247
        %v426 = vunpack.c.l.b16 %v248
        %v427 = vunpack.c.h.b16 %v248
        %v428 = vunpack.c.l.b16 %v249
        %v429 = vunpack.c.h.b16 %v249
        %v430 = vunpack.c.l.b16 %v250
        %v431 = vunpack.c.h.b16 %v250
        %v432 = vunpack.c.l.b16 %v251
        %v433 = vunpack.c.h.b16 %v251
        %v434 = vunpack.c.l.b16 %v252
        %v435 = vunpack.c.h.b16 %v252
        %v436 = vunpack.c.l.b16 %v253
        %v437 = vunpack.c.h.b16 %v253
        %v438 = vunpack.c.l.b16 %v254
        %v439 = vunpack.c.h.b16 %v254
        %v440 = vunpack.c.l.b16 %v255
        %v441 = vunpack.c.h.b16 %v255
        %v442 = vunpack.c.l.b16 %v256
        %v443 = vunpack.c.h.b16 %v256
        %v444 = vunpack.c.l.b16 %v257
        %v445 = vunpack.c.h.b16 %v257
        %v446 = vunpack.c.l.b16 %v258
        %v447 = vunpack.c.h.b16 %v258
        %v448 = vunpack.c.l.b16 %v259
        %v449 = vunpack.c.h.b16 %v259
        %v450 = vunpack.c.l.b16 %v260
        %v451 = vunpack.c.h.b16 %v260
        %v452 = vunpack.c.l.b16 %v261
        %v453 = vunpack.c.h.b16 %v261
        %v454 = vunpack.c.l.b16 %v262
        %v455 = vunpack.c.h.b16 %v262
        %v456 = vunpack.c.l.b16 %v263
        %v457 = vunpack.c.h.b16 %v263
        %v458 = vunpack.c.l.b16 %v264
        %v459 = vunpack.c.h.b16 %v264
        %v460 = vunpack.c.l.b16 %v265
        %v461 = vunpack.c.h.b16 %v265
        %v462 = vunpack.c.l.b16 %v266
        %v463 = vunpack.c.h.b16 %v266
        %v464 = vunpack.c.l.b16 %v267
        %v465 = vunpack.c.h.b16 %v267
        %v466 = vunpack.c.l.b16 %v268
        %v467 = vunpack.c.h.b16 %v268
        %v468 = vunpack.c.l.b16 %v269
        %v469 = vunpack.c.h.b16 %v269
        %v470 = vunpack.c.l.b16 %v270
        %v471 = vunpack.c.h.b16 %v270
        %v472 = vunpack.c.l.b16 %v271
        %v473 = vunpack.c.h.b16 %v271
        %v474 = vunpack.c.l.b16 %v272
        %v475 = vunpack.c.h.b16 %v272
        %v476 = vunpack.c.l.b16 %v273
        %v477 = vunpack.c.h.b16 %v273
        %v478 = vunpack.c.l.b16 %v274
        %v479 = vunpack.c.h.b16 %v274
        %v480 = vunpack.c.l.b16 %v275
        %v481 = vunpack.c.h.b16 %v275
        %v482 = vunpack.c.l.b16 %v276
        %v483 = vunpack.c.h.b16 %v276
        %v484 = vunpack.c.l.b16 %v277
        %v485 = vunpack.c.h.b16 %v277
        %v486 = vunpack.c.l.b16 %v278
        %v487 = vunpack.c.h.b16 %v278
        %v488 = vunpack.c.l.b16 %v279
        %v489 = vunpack.c.h.b16 %v279
        %v490 = vunpack.c.l.b16 %v280
        %v491 = vunpack.c.h.b16 %v280
        %v492 = vunpack.c.l.b16 %v281
        %v493 = vunpack.c.h.b16 %v281
        %v494 = vunpack.c.l.b16 %v282
        %v495 = vunpack.c.h.b16 %v282
        %v496 = vunpack.c.l.b16 %v283
        %v497 = vunpack.c.h.b16 %v283
        %v498 = vunpack.c.l.b16 %v284
        %v499 = vunpack.c.h.b16 %v284
        %v500 = vpack.c.b16 %v374, %v372
        %v501 = vpack.c.b16 %v375, %v373
        %v502 = vpack.c.b16 %v378, %v376
        %v503 = vpack.c.b16 %v379, %v377
        %v504 = vpack.c.b16 %v382, %v380
        %v505 = vpack.c.b16 %v383, %v381
        %v506 = vpack.c.b16 %v386, %v384
        %v507 = vpack.c.b16 %v387, %v385
        %v508 = vpack.c.b16 %v390, %v388
        %v509 = vpack.c.b16 %v391, %v389
        %v510 = vpack.c.b16 %v394, %v392
        %v511 = vpack.c.b16 %v395, %v393
        %v512 = vpack.c.b16 %v398, %v396
        %v513 = vpack.c.b16 %v399, %v397
        %v514 = vpack.c.b16 %v402, %v400
        %v515 = vpack.c.b16 %v403, %v401
        %v516 = vpack.c.b16 %v406, %v404
        %v517 = vpack.c.b16 %v407, %v405
        %v518 = vpack.c.b16 %v410, %v408
        %v519 = vpack.c.b16 %v411, %v409
        %v520 = vpack.c.b16 %v414, %v412
        %v521 = vpack.c.b16 %v415, %v413
        %v522 = vpack.c.b16 %v418, %v416
        %v523 = vpack.c.b16 %v419, %v417
        %v524 = vpack.c.b16 %v422, %v420
        %v525 = vpack.c.b16 %v423, %v421
        %v526 = vpack.c.b16 %v426, %v424
        %v527 = vpack.c.b16 %v427, %v425
        %v528 = vpack.c.b16 %v430, %v428
        %v529 = vpack.c.b16 %v431, %v429
        %v530 = vpack.c.b16 %v434, %v432
        %v531 = vpack.c.b16 %v435, %v433
        %v532 = vpack.c.b16 %v438, %v436
        %v533 = vpack.c.b16 %v439, %v437
        %v534 = vpack.c.b16 %v442, %v440
        %v535 = vpack.c.b16 %v443, %v441
        %v536 = vpack.c.b16 %v446, %v444
        %v537 = vpack.c.b16 %v447, %v445
        %v538 = vpack.c.b16 %v450, %v448
        %v539 = vpack.c.b16 %v451, %v449
        %v540 = vpack.c.b16 %v454, %v452
        %v541 = vpack.c.b16 %v455, %v453
        %v542 = vpack.c.b16 %v458, %v456
        %v543 = vpack.c.b16 %v459, %v457
        %v544 = vpack.c.b16 %v462, %v460
        %v545 = vpack.c.b16 %v463, %v461
        %v546 = vpack.c.b16 %v466, %v464
        %v547 = vpack.c.b16 %v467, %v465
        %v548 = vpack.c.b16 %v470, %v468
        %v549 = vpack.c.b16 %v471, %v469
        %v550 = vpack.c.b16 %v474, %v472
        %v551 = vpack.c.b16 %v475, %v473
        %v552 = vpack.c.b16 %v478, %v476
        %v553 = vpack.c.b16 %v479, %v477
        %v554 = vpack.c.b16 %v482, %v480
        %v555 = vpack.c.b16 %v483, %v481
        %v556 = vpack.c.b16 %v486, %v484
        %v557 = vpack.c.b16 %v487, %v485
        %v558 = vpack.c.b16 %v490, %v488
        %v559 = vpack.c.b16 %v491, %v489
        %v560 = vpack.c.b16 %v494, %v492
        %v561 = vpack.c.b16 %v495, %v493
        %v562 = vpack.c.b16 %v498, %v496
        %v563 = vpack.c.b16 %v499, %v497
        %v615 = vunpack.c.l.b16 %v285
        %v616 = vunpack.c.l.b16 %v286
        %v617 = vunpack.c.l.b16 %v287
        %v618 = vunpack.c.l.b16 %v288
        %v619 = vunpack.c.l.b16 %v289
        %v620 = vunpack.c.l.b16 %v290
        %v621 = vunpack.c.l.b16 %v291
        %v622 = vunpack.c.l.b16 %v292
        %v623 = vunpack.c.l.b16 %v293
        %v624 = vunpack.c.l.b16 %v294
        %v625 = vunpack.c.l.b16 %v295
        %v626 = vunpack.c.l.b16 %v296
        %v627 = vunpack.c.l.b16 %v297
        %v628 = vunpack.c.l.b16 %v298
        %v629 = vunpack.c.l.b16 %v299
        %v630 = vunpack.c.l.b16 %v300
        %v631 = vunpack.c.l.b16 %v301
        %v632 = vunpack.c.l.b16 %v302
        %v633 = vunpack.c.l.b16 %v303
        %v634 = vpack.c.b16 %v616, %v615
        %v635 = vpack.c.b16 %v618, %v617
        %v636 = vpack.c.b16 %v620, %v619
        %v637 = vpack.c.b16 %v622, %v621
        %v638 = vpack.c.b16 %v624, %v623
        %v639 = vpack.c.b16 %v626, %v625
        %v640 = vpack.c.b16 %v628, %v627
        %v641 = vpack.c.b16 %v630, %v629
        %v642 = vpack.c.b16 %v632, %v631
        %v643 = vpack.c.b16 %v633, %v633
        %vm653 = vcmask 154624
        %v655 = vsel %vm653, %v501, 0
        %v658 = vsel %vm653, %v503, 0
        %v661 = vsel %vm653, %v505, 0
        %v664 = vsel %vm653, %v507, 0
        %v667 = vsel %vm653, %v509, 0
        %v670 = vsel %vm653, %v511, 0
        %v673 = vsel %vm653, %v513, 0
        %v676 = vsel %vm653, %v515, 0
        %v679 = vsel %vm653, %v517, 0
        %v682 = vsel %vm653, %v519, 0
        %v685 = vsel %vm653, %v521, 0
        %v688 = vsel %vm653, %v523, 0
        %v691 = vsel %vm653, %v525, 0
        %v694 = vsel %vm653, %v527, 0
        %v697 = vsel %vm653, %v529, 0
        %v700 = vsel %vm653, %v531, 0
        %v703 = vsel %vm653, %v533, 0
        %v706 = vsel %vm653, %v535, 0
        %v709 = vsel %vm653, %v537, 0
        %v712 = vsel %vm653, %v539, 0
        %v715 = vsel %vm653, %v541, 0
        %v718 = vsel %vm653, %v543, 0
        %v721 = vsel %vm653, %v545, 0
        %v724 = vsel %vm653, %v547, 0
        %v727 = vsel %vm653, %v549, 0
        %v730 = vsel %vm653, %v551, 0
        %v733 = vsel %vm653, %v553, 0
        %v736 = vsel %vm653, %v555, 0
        %v739 = vsel %vm653, %v557, 0
        %v742 = vsel %vm653, %v559, 0
        %v745 = vsel %vm653, %v561, 0
        %v748 = vsel %vm653, %v563, 0
        %vm750 = vcmask 1040384
        %vm751 = vcmask 1041408
        %v752 = vsel %vm750, 4294967295, 65535
        %v753 = vsel %vm751, %v752, 0
        %v755 = vand.u32 %v643, %v753
        %757 = vmatpush.bf16.msra.mxu0 %v641
        %758 = vmatpush.bf16.msra.mxu0 %v640
        %759 = vmatpush.bf16.msra.mxu0 %v639
        %760 = vmatpush.bf16.msra.mxu0 %v638
        %761 = vmatpush.bf16.msra.mxu0 %v637
        %762 = vmatpush.bf16.msra.mxu0 %v636
        %763 = vmatpush.bf16.msra.mxu0 %v635
        %764 = vmatpush.bf16.msra.mxu0 %v634
        %765 = vmatmul.bf16.gmra.mxu0 %v500
        %v766 = vpop.f32.mrf.mxu0
        %v767 = vadd.f32 %v306, %v766
        %v768 = vpop.f32.mrf.mxu0
        %v769 = vadd.f32 %v306, %v768
        %770 = vmatmul.bf16.gmra.mxu0 %v502
        %v771 = vpop.f32.mrf.mxu0
        %v772 = vadd.f32 %v306, %v771
        %v773 = vpop.f32.mrf.mxu0
        %v774 = vadd.f32 %v306, %v773
        %775 = vmatmul.bf16.gmra.mxu0 %v504
        %v776 = vpop.f32.mrf.mxu0
        %v777 = vadd.f32 %v306, %v776
        %v778 = vpop.f32.mrf.mxu0
        %v779 = vadd.f32 %v306, %v778
        %780 = vmatmul.bf16.gmra.mxu0 %v506
        %v781 = vpop.f32.mrf.mxu0
        %v782 = vadd.f32 %v306, %v781
        %v783 = vpop.f32.mrf.mxu0
        %v784 = vadd.f32 %v306, %v783
        %785 = vmatmul.bf16.gmra.mxu0 %v508
        %v786 = vpop.f32.mrf.mxu0
        %v787 = vadd.f32 %v306, %v786
        %v788 = vpop.f32.mrf.mxu0
        %v789 = vadd.f32 %v306, %v788
        %790 = vmatmul.bf16.gmra.mxu0 %v510
        %v791 = vpop.f32.mrf.mxu0
        %v792 = vadd.f32 %v306, %v791
        %v793 = vpop.f32.mrf.mxu0
        %v794 = vadd.f32 %v306, %v793
        %795 = vmatmul.bf16.gmra.mxu0 %v512
        %v796 = vpop.f32.mrf.mxu0
        %v797 = vadd.f32 %v306, %v796
        %v798 = vpop.f32.mrf.mxu0
        %v799 = vadd.f32 %v306, %v798
        %800 = vmatmul.bf16.gmra.mxu0 %v514
        %v801 = vpop.f32.mrf.mxu0
        %v802 = vadd.f32 %v306, %v801
        %v803 = vpop.f32.mrf.mxu0
        %v804 = vadd.f32 %v306, %v803
        %805 = vmatmul.bf16.gmra.mxu0 %v516
        %v806 = vpop.f32.mrf.mxu0
        %v807 = vadd.f32 %v306, %v806
        %v808 = vpop.f32.mrf.mxu0
        %v809 = vadd.f32 %v306, %v808
        %810 = vmatmul.bf16.gmra.mxu0 %v518
        %v811 = vpop.f32.mrf.mxu0
        %v812 = vadd.f32 %v306, %v811
        %v813 = vpop.f32.mrf.mxu0
        %v814 = vadd.f32 %v306, %v813
        %815 = vmatmul.bf16.gmra.mxu0 %v520
        %v816 = vpop.f32.mrf.mxu0
        %v817 = vadd.f32 %v306, %v816
        %v818 = vpop.f32.mrf.mxu0
        %v819 = vadd.f32 %v306, %v818
        %820 = vmatmul.bf16.gmra.mxu0 %v522
        %v821 = vpop.f32.mrf.mxu0
        %v822 = vadd.f32 %v306, %v821
        %v823 = vpop.f32.mrf.mxu0
        %v824 = vadd.f32 %v306, %v823
        %825 = vmatmul.bf16.gmra.mxu0 %v524
        %v826 = vpop.f32.mrf.mxu0
        %v827 = vadd.f32 %v306, %v826
        %v828 = vpop.f32.mrf.mxu0
        %v829 = vadd.f32 %v306, %v828
        %830 = vmatmul.bf16.gmra.mxu0 %v526
        %v831 = vpop.f32.mrf.mxu0
        %v832 = vadd.f32 %v306, %v831
        %v833 = vpop.f32.mrf.mxu0
        %v834 = vadd.f32 %v306, %v833
        %835 = vmatmul.bf16.gmra.mxu0 %v528
        %v836 = vpop.f32.mrf.mxu0
        %v837 = vadd.f32 %v306, %v836
        %v838 = vpop.f32.mrf.mxu0
        %v839 = vadd.f32 %v306, %v838
        %840 = vmatmul.bf16.gmra.mxu0 %v530
        %v841 = vpop.f32.mrf.mxu0
        %v842 = vadd.f32 %v306, %v841
        %v843 = vpop.f32.mrf.mxu0
        %v844 = vadd.f32 %v306, %v843
        %845 = vmatmul.bf16.gmra.mxu0 %v532
        %v846 = vpop.f32.mrf.mxu0
        %v847 = vadd.f32 %v306, %v846
        %v848 = vpop.f32.mrf.mxu0
        %v849 = vadd.f32 %v306, %v848
        %850 = vmatmul.bf16.gmra.mxu0 %v534
        %v851 = vpop.f32.mrf.mxu0
        %v852 = vadd.f32 %v306, %v851
        %v853 = vpop.f32.mrf.mxu0
        %v854 = vadd.f32 %v306, %v853
        %855 = vmatmul.bf16.gmra.mxu0 %v536
        %v856 = vpop.f32.mrf.mxu0
        %v857 = vadd.f32 %v306, %v856
        %v858 = vpop.f32.mrf.mxu0
        %v859 = vadd.f32 %v306, %v858
        %860 = vmatmul.bf16.gmra.mxu0 %v538
        %v861 = vpop.f32.mrf.mxu0
        %v862 = vadd.f32 %v306, %v861
        %v863 = vpop.f32.mrf.mxu0
        %v864 = vadd.f32 %v306, %v863
        %865 = vmatmul.bf16.gmra.mxu0 %v540
        %v866 = vpop.f32.mrf.mxu0
        %v867 = vadd.f32 %v306, %v866
        %v868 = vpop.f32.mrf.mxu0
        %v869 = vadd.f32 %v306, %v868
        %870 = vmatmul.bf16.gmra.mxu0 %v542
        %v871 = vpop.f32.mrf.mxu0
        %v872 = vadd.f32 %v306, %v871
        %v873 = vpop.f32.mrf.mxu0
        %v874 = vadd.f32 %v306, %v873
        %875 = vmatmul.bf16.gmra.mxu0 %v544
        %v876 = vpop.f32.mrf.mxu0
        %v877 = vadd.f32 %v306, %v876
        %v878 = vpop.f32.mrf.mxu0
        %v879 = vadd.f32 %v306, %v878
        %880 = vmatmul.bf16.gmra.mxu0 %v546
        %v881 = vpop.f32.mrf.mxu0
        %v882 = vadd.f32 %v306, %v881
        %v883 = vpop.f32.mrf.mxu0
        %v884 = vadd.f32 %v306, %v883
        %885 = vmatmul.bf16.gmra.mxu0 %v548
        %v886 = vpop.f32.mrf.mxu0
        %v887 = vadd.f32 %v306, %v886
        %v888 = vpop.f32.mrf.mxu0
        %v889 = vadd.f32 %v306, %v888
        %890 = vmatmul.bf16.gmra.mxu0 %v550
        %v891 = vpop.f32.mrf.mxu0
        %v892 = vadd.f32 %v306, %v891
        %v893 = vpop.f32.mrf.mxu0
        %v894 = vadd.f32 %v306, %v893
        %895 = vmatmul.bf16.gmra.mxu0 %v552
        %v896 = vpop.f32.mrf.mxu0
        %v897 = vadd.f32 %v306, %v896
        %v898 = vpop.f32.mrf.mxu0
        %v899 = vadd.f32 %v306, %v898
        %900 = vmatmul.bf16.gmra.mxu0 %v554
        %v901 = vpop.f32.mrf.mxu0
        %v902 = vadd.f32 %v306, %v901
        %v903 = vpop.f32.mrf.mxu0
        %v904 = vadd.f32 %v306, %v903
        %905 = vmatmul.bf16.gmra.mxu0 %v556
        %v906 = vpop.f32.mrf.mxu0
        %v907 = vadd.f32 %v306, %v906
        %v908 = vpop.f32.mrf.mxu0
        %v909 = vadd.f32 %v306, %v908
        %910 = vmatmul.bf16.gmra.mxu0 %v558
        %v911 = vpop.f32.mrf.mxu0
        %v912 = vadd.f32 %v306, %v911
        %v913 = vpop.f32.mrf.mxu0
        %v914 = vadd.f32 %v306, %v913
        %915 = vmatmul.bf16.gmra.mxu0 %v560
        %v916 = vpop.f32.mrf.mxu0
        %v917 = vadd.f32 %v306, %v916
        %v918 = vpop.f32.mrf.mxu0
        %v919 = vadd.f32 %v306, %v918
        %920 = vmatmul.bf16.gmra.mxu0 %v562
        %v921 = vpop.f32.mrf.mxu0
        %v922 = vadd.f32 %v306, %v921
        %v923 = vpop.f32.mrf.mxu0
        %v924 = vadd.f32 %v306, %v923
        %925 = vdwg.mxu0
        %926 = vmatpush.bf16.msra.mxu0 0
        %927 = vmatpush.bf16.msra.mxu0 0
        %928 = vmatpush.bf16.msra.mxu0 0
        %929 = vmatpush.bf16.msra.mxu0 0
        %930 = vmatpush.bf16.msra.mxu0 0
        %931 = vmatpush.bf16.msra.mxu0 0
        %932 = vmatpush.bf16.msra.mxu0 %v755
        %933 = vmatpush.bf16.msra.mxu0 %v642
        %934 = vmatmul.bf16.gmra.mxu0 %v655
        %v935 = vpop.f32.mrf.mxu0
        %v936 = vadd.f32 %v767, %v935
        %v937 = vpop.f32.mrf.mxu0
        %v938 = vadd.f32 %v769, %v937
        %939 = vmatmul.bf16.gmra.mxu0 %v658
        %v940 = vpop.f32.mrf.mxu0
        %v941 = vadd.f32 %v772, %v940
        %v942 = vpop.f32.mrf.mxu0
        %v943 = vadd.f32 %v774, %v942
        %944 = vmatmul.bf16.gmra.mxu0 %v661
        %v945 = vpop.f32.mrf.mxu0
        %v946 = vadd.f32 %v777, %v945
        %v947 = vpop.f32.mrf.mxu0
        %v948 = vadd.f32 %v779, %v947
        %949 = vmatmul.bf16.gmra.mxu0 %v664
        %v950 = vpop.f32.mrf.mxu0
        %v951 = vadd.f32 %v782, %v950
        %v952 = vpop.f32.mrf.mxu0
        %v953 = vadd.f32 %v784, %v952
        %954 = vmatmul.bf16.gmra.mxu0 %v667
        %v955 = vpop.f32.mrf.mxu0
        %v956 = vadd.f32 %v787, %v955
        %v957 = vpop.f32.mrf.mxu0
        %v958 = vadd.f32 %v789, %v957
        %959 = vmatmul.bf16.gmra.mxu0 %v670
        %v960 = vpop.f32.mrf.mxu0
        %v961 = vadd.f32 %v792, %v960
        %v962 = vpop.f32.mrf.mxu0
        %v963 = vadd.f32 %v794, %v962
        %964 = vmatmul.bf16.gmra.mxu0 %v673
        %v965 = vpop.f32.mrf.mxu0
        %v966 = vadd.f32 %v797, %v965
        %v967 = vpop.f32.mrf.mxu0
        %v968 = vadd.f32 %v799, %v967
        %969 = vmatmul.bf16.gmra.mxu0 %v676
        %v970 = vpop.f32.mrf.mxu0
        %v971 = vadd.f32 %v802, %v970
        %v972 = vpop.f32.mrf.mxu0
        %v973 = vadd.f32 %v804, %v972
        %974 = vmatmul.bf16.gmra.mxu0 %v679
        %v975 = vpop.f32.mrf.mxu0
        %v976 = vadd.f32 %v807, %v975
        %v977 = vpop.f32.mrf.mxu0
        %v978 = vadd.f32 %v809, %v977
        %979 = vmatmul.bf16.gmra.mxu0 %v682
        %v980 = vpop.f32.mrf.mxu0
        %v981 = vadd.f32 %v812, %v980
        %v982 = vpop.f32.mrf.mxu0
        %v983 = vadd.f32 %v814, %v982
        %984 = vmatmul.bf16.gmra.mxu0 %v685
        %v985 = vpop.f32.mrf.mxu0
        %v986 = vadd.f32 %v817, %v985
        %v987 = vpop.f32.mrf.mxu0
        %v988 = vadd.f32 %v819, %v987
        %989 = vmatmul.bf16.gmra.mxu0 %v688
        %v990 = vpop.f32.mrf.mxu0
        %v991 = vadd.f32 %v822, %v990
        %v992 = vpop.f32.mrf.mxu0
        %v993 = vadd.f32 %v824, %v992
        %994 = vmatmul.bf16.gmra.mxu0 %v691
        %v995 = vpop.f32.mrf.mxu0
        %v996 = vadd.f32 %v827, %v995
        %v997 = vpop.f32.mrf.mxu0
        %v998 = vadd.f32 %v829, %v997
        %999 = vmatmul.bf16.gmra.mxu0 %v694
        %v1000 = vpop.f32.mrf.mxu0
        %v1001 = vadd.f32 %v832, %v1000
        %v1002 = vpop.f32.mrf.mxu0
        %v1003 = vadd.f32 %v834, %v1002
        %1004 = vmatmul.bf16.gmra.mxu0 %v697
        %v1005 = vpop.f32.mrf.mxu0
        %v1006 = vadd.f32 %v837, %v1005
        %v1007 = vpop.f32.mrf.mxu0
        %v1008 = vadd.f32 %v839, %v1007
        %1009 = vmatmul.bf16.gmra.mxu0 %v700
        %v1010 = vpop.f32.mrf.mxu0
        %v1011 = vadd.f32 %v842, %v1010
        %v1012 = vpop.f32.mrf.mxu0
        %v1013 = vadd.f32 %v844, %v1012
        %1014 = vmatmul.bf16.gmra.mxu0 %v703
        %v1015 = vpop.f32.mrf.mxu0
        %v1016 = vadd.f32 %v847, %v1015
        %v1017 = vpop.f32.mrf.mxu0
        %v1018 = vadd.f32 %v849, %v1017
        %1019 = vmatmul.bf16.gmra.mxu0 %v706
        %v1020 = vpop.f32.mrf.mxu0
        %v1021 = vadd.f32 %v852, %v1020
        %v1022 = vpop.f32.mrf.mxu0
        %v1023 = vadd.f32 %v854, %v1022
        %1024 = vmatmul.bf16.gmra.mxu0 %v709
        %v1025 = vpop.f32.mrf.mxu0
        %v1026 = vadd.f32 %v857, %v1025
        %v1027 = vpop.f32.mrf.mxu0
        %v1028 = vadd.f32 %v859, %v1027
        %1029 = vmatmul.bf16.gmra.mxu0 %v712
        %v1030 = vpop.f32.mrf.mxu0
        %v1031 = vadd.f32 %v862, %v1030
        %v1032 = vpop.f32.mrf.mxu0
        %v1033 = vadd.f32 %v864, %v1032
        %1034 = vmatmul.bf16.gmra.mxu0 %v715
        %v1035 = vpop.f32.mrf.mxu0
        %v1036 = vadd.f32 %v867, %v1035
        %v1037 = vpop.f32.mrf.mxu0
        %v1038 = vadd.f32 %v869, %v1037
        %1039 = vmatmul.bf16.gmra.mxu0 %v718
        %v1040 = vpop.f32.mrf.mxu0
        %v1041 = vadd.f32 %v872, %v1040
        %v1042 = vpop.f32.mrf.mxu0
        %v1043 = vadd.f32 %v874, %v1042
        %1044 = vmatmul.bf16.gmra.mxu0 %v721
        %v1045 = vpop.f32.mrf.mxu0
        %v1046 = vadd.f32 %v877, %v1045
        %v1047 = vpop.f32.mrf.mxu0
        %v1048 = vadd.f32 %v879, %v1047
        %1049 = vmatmul.bf16.gmra.mxu0 %v724
        %v1050 = vpop.f32.mrf.mxu0
        %v1051 = vadd.f32 %v882, %v1050
        %v1052 = vpop.f32.mrf.mxu0
        %v1053 = vadd.f32 %v884, %v1052
        %1054 = vmatmul.bf16.gmra.mxu0 %v727
        %v1055 = vpop.f32.mrf.mxu0
        %v1056 = vadd.f32 %v887, %v1055
        %v1057 = vpop.f32.mrf.mxu0
        %v1058 = vadd.f32 %v889, %v1057
        %1059 = vmatmul.bf16.gmra.mxu0 %v730
        %v1060 = vpop.f32.mrf.mxu0
        %v1061 = vadd.f32 %v892, %v1060
        %v1062 = vpop.f32.mrf.mxu0
        %v1063 = vadd.f32 %v894, %v1062
        %1064 = vmatmul.bf16.gmra.mxu0 %v733
        %v1065 = vpop.f32.mrf.mxu0
        %v1066 = vadd.f32 %v897, %v1065
        %v1067 = vpop.f32.mrf.mxu0
        %v1068 = vadd.f32 %v899, %v1067
        %1069 = vmatmul.bf16.gmra.mxu0 %v736
        %v1070 = vpop.f32.mrf.mxu0
        %v1071 = vadd.f32 %v902, %v1070
        %v1072 = vpop.f32.mrf.mxu0
        %v1073 = vadd.f32 %v904, %v1072
        %1074 = vmatmul.bf16.gmra.mxu0 %v739
        %v1075 = vpop.f32.mrf.mxu0
        %v1076 = vadd.f32 %v907, %v1075
        %v1077 = vpop.f32.mrf.mxu0
        %v1078 = vadd.f32 %v909, %v1077
        %1079 = vmatmul.bf16.gmra.mxu0 %v742
        %v1080 = vpop.f32.mrf.mxu0
        %v1081 = vadd.f32 %v912, %v1080
        %v1082 = vpop.f32.mrf.mxu0
        %v1083 = vadd.f32 %v914, %v1082
        %1084 = vmatmul.bf16.gmra.mxu0 %v745
        %v1085 = vpop.f32.mrf.mxu0
        %v1086 = vadd.f32 %v917, %v1085
        %v1087 = vpop.f32.mrf.mxu0
        %v1088 = vadd.f32 %v919, %v1087
        %1089 = vmatmul.bf16.gmra.mxu0 %v748
        %v1090 = vpop.f32.mrf.mxu0
        %v1091 = vadd.f32 %v922, %v1090
        %v1092 = vpop.f32.mrf.mxu0
        %v1093 = vadd.f32 %v924, %v1092
        %1094 = vdwg.mxu0
        %v1095 = vmax.f32 %v936, 0.0
        %v1096 = vmax.f32 %v938, 0.0
        %v1097 = vmax.f32 %v941, 0.0
        %v1098 = vmax.f32 %v943, 0.0
        %v1099 = vmax.f32 %v946, 0.0
        %v1100 = vmax.f32 %v948, 0.0
        %v1101 = vmax.f32 %v951, 0.0
        %v1102 = vmax.f32 %v953, 0.0
        %v1103 = vmax.f32 %v956, 0.0
        %v1104 = vmax.f32 %v958, 0.0
        %v1105 = vmax.f32 %v961, 0.0
        %v1106 = vmax.f32 %v963, 0.0
        %v1107 = vmax.f32 %v966, 0.0
        %v1108 = vmax.f32 %v968, 0.0
        %v1109 = vmax.f32 %v971, 0.0
        %v1110 = vmax.f32 %v973, 0.0
        %v1111 = vmax.f32 %v976, 0.0
        %v1112 = vmax.f32 %v978, 0.0
        %v1113 = vmax.f32 %v981, 0.0
        %v1114 = vmax.f32 %v983, 0.0
        %v1115 = vmax.f32 %v986, 0.0
        %v1116 = vmax.f32 %v988, 0.0
        %v1117 = vmax.f32 %v991, 0.0
        %v1118 = vmax.f32 %v993, 0.0
        %v1119 = vmax.f32 %v996, 0.0
        %v1120 = vmax.f32 %v998, 0.0
        %v1121 = vmax.f32 %v1001, 0.0
        %v1122 = vmax.f32 %v1003, 0.0
        %v1123 = vmax.f32 %v1006, 0.0
        %v1124 = vmax.f32 %v1008, 0.0
        %v1125 = vmax.f32 %v1011, 0.0
        %v1126 = vmax.f32 %v1013, 0.0
        %v1127 = vmax.f32 %v1016, 0.0
        %v1128 = vmax.f32 %v1018, 0.0
        %v1129 = vmax.f32 %v1021, 0.0
        %v1130 = vmax.f32 %v1023, 0.0
        %v1131 = vmax.f32 %v1026, 0.0
        %v1132 = vmax.f32 %v1028, 0.0
        %v1133 = vmax.f32 %v1031, 0.0
        %v1134 = vmax.f32 %v1033, 0.0
        %v1135 = vmax.f32 %v1036, 0.0
        %v1136 = vmax.f32 %v1038, 0.0
        %v1137 = vmax.f32 %v1041, 0.0
        %v1138 = vmax.f32 %v1043, 0.0
        %v1139 = vmax.f32 %v1046, 0.0
        %v1140 = vmax.f32 %v1048, 0.0
        %v1141 = vmax.f32 %v1051, 0.0
        %v1142 = vmax.f32 %v1053, 0.0
        %v1143 = vmax.f32 %v1056, 0.0
        %v1144 = vmax.f32 %v1058, 0.0
        %v1145 = vmax.f32 %v1061, 0.0
        %v1146 = vmax.f32 %v1063, 0.0
        %v1147 = vmax.f32 %v1066, 0.0
        %v1148 = vmax.f32 %v1068, 0.0
        %v1149 = vmax.f32 %v1071, 0.0
        %v1150 = vmax.f32 %v1073, 0.0
        %v1151 = vmax.f32 %v1076, 0.0
        %v1152 = vmax.f32 %v1078, 0.0
        %v1153 = vmax.f32 %v1081, 0.0
        %v1154 = vmax.f32 %v1083, 0.0
        %v1155 = vmax.f32 %v1086, 0.0
        %v1156 = vmax.f32 %v1088, 0.0
        %v1157 = vmax.f32 %v1091, 0.0
        %v1158 = vmax.f32 %v1093, 0.0
        %v1159 = vpack.c.bf16 %v1095, %v1095
        %v1160 = vpack.c.bf16 %v1096, %v1096
        %v1161 = vpack.c.bf16 %v1097, %v1097
        %v1162 = vpack.c.bf16 %v1098, %v1098
        %v1163 = vpack.c.bf16 %v1099, %v1099
        %v1164 = vpack.c.bf16 %v1100, %v1100
        %v1165 = vpack.c.bf16 %v1101, %v1101
        %v1166 = vpack.c.bf16 %v1102, %v1102
        %v1167 = vpack.c.bf16 %v1103, %v1103
        %v1168 = vpack.c.bf16 %v1104, %v1104
        %v1169 = vpack.c.bf16 %v1105, %v1105
        %v1170 = vpack.c.bf16 %v1106, %v1106
        %v1171 = vpack.c.bf16 %v1107, %v1107
        %v1172 = vpack.c.bf16 %v1108, %v1108
        %v1173 = vpack.c.bf16 %v1109, %v1109
        %v1174 = vpack.c.bf16 %v1110, %v1110
        %v1175 = vpack.c.bf16 %v1111, %v1111
        %v1176 = vpack.c.bf16 %v1112, %v1112
        %v1177 = vpack.c.bf16 %v1113, %v1113
        %v1178 = vpack.c.bf16 %v1114, %v1114
        %v1179 = vpack.c.bf16 %v1115, %v1115
        %v1180 = vpack.c.bf16 %v1116, %v1116
        %v1181 = vpack.c.bf16 %v1117, %v1117
        %v1182 = vpack.c.bf16 %v1118, %v1118
        %v1183 = vpack.c.bf16 %v1119, %v1119
        %v1184 = vpack.c.bf16 %v1120, %v1120
        %v1185 = vpack.c.bf16 %v1121, %v1121
        %v1186 = vpack.c.bf16 %v1122, %v1122
        %v1187 = vpack.c.bf16 %v1123, %v1123
        %v1188 = vpack.c.bf16 %v1124, %v1124
        %v1189 = vpack.c.bf16 %v1125, %v1125
        %v1190 = vpack.c.bf16 %v1126, %v1126
        %v1191 = vpack.c.bf16 %v1127, %v1127
        %v1192 = vpack.c.bf16 %v1128, %v1128
        %v1193 = vpack.c.bf16 %v1129, %v1129
        %v1194 = vpack.c.bf16 %v1130, %v1130
        %v1195 = vpack.c.bf16 %v1131, %v1131
        %v1196 = vpack.c.bf16 %v1132, %v1132
        %v1197 = vpack.c.bf16 %v1133, %v1133
        %v1198 = vpack.c.bf16 %v1134, %v1134
        %v1199 = vpack.c.bf16 %v1135, %v1135
        %v1200 = vpack.c.bf16 %v1136, %v1136
        %v1201 = vpack.c.bf16 %v1137, %v1137
        %v1202 = vpack.c.bf16 %v1138, %v1138
        %v1203 = vpack.c.bf16 %v1139, %v1139
        %v1204 = vpack.c.bf16 %v1140, %v1140
        %v1205 = vpack.c.bf16 %v1141, %v1141
        %v1206 = vpack.c.bf16 %v1142, %v1142
        %v1207 = vpack.c.bf16 %v1143, %v1143
        %v1208 = vpack.c.bf16 %v1144, %v1144
        %v1209 = vpack.c.bf16 %v1145, %v1145
        %v1210 = vpack.c.bf16 %v1146, %v1146
        %v1211 = vpack.c.bf16 %v1147, %v1147
        %v1212 = vpack.c.bf16 %v1148, %v1148
        %v1213 = vpack.c.bf16 %v1149, %v1149
        %v1214 = vpack.c.bf16 %v1150, %v1150
        %v1215 = vpack.c.bf16 %v1151, %v1151
        %v1216 = vpack.c.bf16 %v1152, %v1152
        %v1217 = vpack.c.bf16 %v1153, %v1153
        %v1218 = vpack.c.bf16 %v1154, %v1154
        %v1219 = vpack.c.bf16 %v1155, %v1155
        %v1220 = vpack.c.bf16 %v1156, %v1156
        %v1221 = vpack.c.bf16 %v1157, %v1157
        %v1222 = vpack.c.bf16 %v1158, %v1158
        %1223 = vst [vmem:[%s204] sm:$0xf] %v1159
        %1224 = vst [vmem:[%s204 + $0x4] sm:$0xf] %v1160
        %1225 = vst [vmem:[%s204 + $0x8] sm:$0xf] %v1161
        %1226 = vst [vmem:[%s204 + $0xc] sm:$0xf] %v1162
        %1227 = vst [vmem:[%s204 + $0x10] sm:$0xf] %v1163
        %1228 = vst [vmem:[%s204 + $0x14] sm:$0xf] %v1164
        %1229 = vst [vmem:[%s204 + $0x18] sm:$0xf] %v1165
        %1230 = vst [vmem:[%s204 + $0x1c] sm:$0xf] %v1166
        %1231 = vst [vmem:[%s204 + $0x20] sm:$0xf] %v1167
        %1232 = vst [vmem:[%s204 + $0x24] sm:$0xf] %v1168
        %1233 = vst [vmem:[%s204 + $0x28] sm:$0xf] %v1169
        %1234 = vst [vmem:[%s204 + $0x2c] sm:$0xf] %v1170
        %1235 = vst [vmem:[%s204 + $0x30] sm:$0xf] %v1171
        %1236 = vst [vmem:[%s204 + $0x34] sm:$0xf] %v1172
        %1237 = vst [vmem:[%s204 + $0x38] sm:$0xf] %v1173
        %1238 = vst [vmem:[%s204 + $0x3c] sm:$0xf] %v1174
        %1239 = vst [vmem:[%s204 + $0x40] sm:$0xf] %v1175
        %1240 = vst [vmem:[%s204 + $0x44] sm:$0xf] %v1176
        %1241 = vst [vmem:[%s204 + $0x48] sm:$0xf] %v1177
        %1242 = vst [vmem:[%s204 + $0x4c] sm:$0xf] %v1178
        %1243 = vst [vmem:[%s204 + $0x50] sm:$0xf] %v1179
        %1244 = vst [vmem:[%s204 + $0x54] sm:$0xf] %v1180
        %1245 = vst [vmem:[%s204 + $0x58] sm:$0xf] %v1181
        %1246 = vst [vmem:[%s204 + $0x5c] sm:$0xf] %v1182
        %1247 = vst [vmem:[%s204 + $0x60] sm:$0xf] %v1183
        %1248 = vst [vmem:[%s204 + $0x64] sm:$0xf] %v1184
        %1249 = vst [vmem:[%s204 + $0x68] sm:$0xf] %v1185
        %1250 = vst [vmem:[%s204 + $0x6c] sm:$0xf] %v1186
        %1251 = vst [vmem:[%s204 + $0x70] sm:$0xf] %v1187
        %1252 = vst [vmem:[%s204 + $0x74] sm:$0xf] %v1188
        %1253 = vst [vmem:[%s204 + $0x78] sm:$0xf] %v1189
        %1254 = vst [vmem:[%s204 + $0x7c] sm:$0xf] %v1190
        %1255 = vst [vmem:[%s204 + $0x80] sm:$0xf] %v1191
        %1256 = vst [vmem:[%s204 + $0x84] sm:$0xf] %v1192
        %1257 = vst [vmem:[%s204 + $0x88] sm:$0xf] %v1193
        %1258 = vst [vmem:[%s204 + $0x8c] sm:$0xf] %v1194
        %1259 = vst [vmem:[%s204 + $0x90] sm:$0xf] %v1195
        %1260 = vst [vmem:[%s204 + $0x94] sm:$0xf] %v1196
        %1261 = vst [vmem:[%s204 + $0x98] sm:$0xf] %v1197
        %1262 = vst [vmem:[%s204 + $0x9c] sm:$0xf] %v1198
        %1263 = vst [vmem:[%s204 + $0xa0] sm:$0xf] %v1199
        %1264 = vst [vmem:[%s204 + $0xa4] sm:$0xf] %v1200
        %1265 = vst [vmem:[%s204 + $0xa8] sm:$0xf] %v1201
        %1266 = vst [vmem:[%s204 + $0xac] sm:$0xf] %v1202
        %1267 = vst [vmem:[%s204 + $0xb0] sm:$0xf] %v1203
        %1268 = vst [vmem:[%s204 + $0xb4] sm:$0xf] %v1204
        %1269 = vst [vmem:[%s204 + $0xb8] sm:$0xf] %v1205
        %1270 = vst [vmem:[%s204 + $0xbc] sm:$0xf] %v1206
        %1271 = vst [vmem:[%s204 + $0xc0] sm:$0xf] %v1207
        %1272 = vst [vmem:[%s204 + $0xc4] sm:$0xf] %v1208
        %1273 = vst [vmem:[%s204 + $0xc8] sm:$0xf] %v1209
        %1274 = vst [vmem:[%s204 + $0xcc] sm:$0xf] %v1210
        %1275 = vst [vmem:[%s204 + $0xd0] sm:$0xf] %v1211
        %1276 = vst [vmem:[%s204 + $0xd4] sm:$0xf] %v1212
        %1277 = vst [vmem:[%s204 + $0xd8] sm:$0xf] %v1213
        %1278 = vst [vmem:[%s204 + $0xdc] sm:$0xf] %v1214
        %1279 = vst [vmem:[%s204 + $0xe0] sm:$0xf] %v1215
        %1280 = vst [vmem:[%s204 + $0xe4] sm:$0xf] %v1216
        %1281 = vst [vmem:[%s204 + $0xe8] sm:$0xf] %v1217
        %1282 = vst [vmem:[%s204 + $0xec] sm:$0xf] %v1218
        %1283 = vst [vmem:[%s204 + $0xf0] sm:$0xf] %v1219
        %1284 = vst [vmem:[%s204 + $0xf4] sm:$0xf] %v1220
        %1285 = vst [vmem:[%s204 + $0xf8] sm:$0xf] %v1221
        %1286 = vst [vmem:[%s204 + $0xfc] sm:$0xf] %v1222
        %s1287 = sand.u32 %s117, 1
        %s1288 = scalar_lea.sflag [#allocation3], %s1287
        %s1289 = sand.u32 %s117, 1
        %s1290 = smul.addr %s1289, 256
        %s1291 = scalar_lea.vmem [#allocation2], %s1290
        // Predicated region
        $region33: #{tpu_custom_call.1} parent=31 // pred_check
          %p1292 = pneg %p127
        $region34: #{tpu_custom_call.1} parent=31 // pred_check_branch
          %1294 = sbr.rel (%p1292) target = $region36
        $region35: #{tpu_custom_call.1} parent=31 // pred_region
          %s1295 = smul.u32 64, %s21
          %1297 = vsyncadd %s1288, 0
          %s1298 = sadd.s32 %s22, %s1295
          %s1299 = smul.addr %s1298, 4
          %s1300 = scalar_lea.hbm %s3, %s1299
          %s1301 = sshll.u32 %s1291, 4
          %s1302 = int_to_ptr.vmem [resolvable:$true] %s1301
          %s1303 = sshll.u32 %s1300, 4
          %s1304 = int_to_ptr.hbm [resolvable:$true] %s1303
          %1309 = dma.vmem_to_hbm [thread:$0]  %s1302, 4096, %s1304, %s1288, 64, 64, 4
        $region36: #{tpu_custom_call.1} parent=31 // pred_fallthru
          _
      $region32: #{tpu_custom_call.1} parent=5 // pred_fallthru
        _
      %p1310 = scmp.le.s32.totalorder 2, %s12
      // Predicated region
      $region37: #{tpu_custom_call.1} parent=5 // pred_check
        %p1311 = pneg %p1310
      $region38: #{tpu_custom_call.1} parent=5 // pred_check_branch
        %1313 = sbr.rel (%p1311) target = $region40
      $region39: #{tpu_custom_call.1} parent=5 // pred_region
        %s1314 = ssub.s32 %s12, 2
        // Predicated region
        $region41: #{tpu_custom_call.1} parent=39 // pred_check
          %p1315 = pneg %p133
        $region42: #{tpu_custom_call.1} parent=39 // pred_check_branch
          %1317 = sbr.rel (%p1315) target = $region44
        $region43: #{tpu_custom_call.1} parent=39 // pred_region
          %s1318 = sand.u32 %s118, 1
          %s1319 = scalar_lea.sflag [#allocation3], %s1318
          %s1320 = sand.u32 %s118, 1
          %s1321 = smul.addr %s1320, 256
          %s1322 = scalar_lea.vmem [#allocation2], %s1321
          %1324 = dma.done %s1319, 4096
        $region44: #{tpu_custom_call.1} parent=39 // pred_fallthru
          _
      $region40: #{tpu_custom_call.1} parent=5 // pred_fallthru
        _
    $region6: #{tpu_custom_call.1} parent=1 // loop_footer
      %s16 = sadd.s32 1, %s12
    $region7: #{tpu_custom_call.1} parent=1 // loop_footer_branch
      %11 = sbr.rel target = $region3
    $region8: #{tpu_custom_call.1} parent=1 // loop_exit
      _
    %1325 = vsyncpa [#allocation3], 1
    %s1326 = scalar_lea.sflag [#allocation3], 1
    %1327 = vsyncpa %s1326, 1

</llo_original>
